<compile_context>
chip_gen: v6e
topology: v6e:2x2x1
jax: 0.10.0
libtpu: 0.0.40
codegen_flags: <defaults>
</compile_context>

<pallas_src>
import jax
import jax.numpy as jnp
from jax.experimental import pallas as pl
from jax.experimental.pallas import tpu as pltpu

NEG_INF = -1e30   # plain Python float -> trace-time literal (no captured arrays)
LANE = 128        # lane-dense width for the classifier output slab


def _make_conv_kernel(hidden, apply_relu, apply_proj, x_transposed):
    """One TemporalGATConv layer, online scatter-softmax over an edge grid."""

    def kernel(time_ref, src_ref, dst_ref, x_ref,
               w_lin_ref, b_lin_ref, w_t_ref, b_t_ref,
               wa_i_ref, wa_j_ref, wa_t_ref, *rest):
        if apply_proj:
            (w_out_ref, b_out_ref, out_ref, h_scr, si_scr, m_scr, acc_scr) = rest
        else:
            (out_ref, h_scr, si_scr, m_scr, acc_scr) = rest

        f32 = jnp.float32
        bf16 = jnp.bfloat16
        step = pl.program_id(0)

        @pl.when(step == 0)
        def _init():
            # Node linear transform, computed once and kept resident in VMEM.
            # w_lin/b_lin are padded so column `hidden` of h_ext is exactly 1.0;
            # that ones-column rides through the gather/scatter matmuls and turns
            # the softmax denominator into one extra accumulator column for free.
            if x_transposed:
                h_ext = jax.lax.dot_general(
                    x_ref[...], w_lin_ref[...], (((0,), (0,)), ((), ())),
                    preferred_element_type=f32) + b_lin_ref[...]
            else:
                h_ext = jnp.dot(x_ref[...], w_lin_ref[...],
                                preferred_element_type=f32) + b_lin_ref[...]
            h_scr[...] = h_ext
            # s_i = <h[dst], wa_i> + b_attn (bias folded into wa_i's last row).
            si_scr[...] = jnp.dot(h_ext, wa_i_ref[...], preferred_element_type=f32)
            m_scr[...] = jnp.full(m_scr.shape, NEG_INF, f32)
            acc_scr[...] = jnp.zeros_like(acc_scr)

        h_ext = h_scr[...]                                       # [N, H+1]
        src = src_ref[...]                                       # [TE, N] bf16
        dst = dst_ref[...]                                       # [TE, N] bf16
        dst_f = dst.astype(f32)                                  # f32 mask once (v5e)

        # temporal encoding: sin(t * w_t + b_t)  (VPU broadcast + EUP sin)
        t_enc = jnp.sin(time_ref[...] * w_t_ref[...] + b_t_ref[...])   # [TE, T]

        # gather source-node embeddings for this edge tile (bf16 MXU, f32 acc)
        h_j = jnp.dot(src, h_ext.astype(bf16), preferred_element_type=f32)  # [TE, H+1]

        # attention logits: <h_j, wa_j> reuses the gathered h_j (no src_oh@s_j pass)
        logit = (jnp.dot(dst_f, si_scr[...], preferred_element_type=f32)
                 + jnp.dot(h_j, wa_j_ref[...], preferred_element_type=f32)
                 + jnp.dot(t_enc, wa_t_ref[...], preferred_element_type=f32))  # [TE,1]
        logit = jnp.where(logit >= 0.0, logit, 0.01 * logit)      # leaky_relu (0.01)

        # ---- online scatter-softmax over edges grouped by destination node ----
        masked = jnp.where(dst_f > 0.0, logit, NEG_INF)           # [TE, N] (tile-bounded)
        m_tile = jnp.max(masked, axis=0, keepdims=True)           # [1, N]
        m_old = m_scr[...]
        m_new = jnp.maximum(m_old, m_tile)
        m_scr[...] = m_new
        scale = jnp.exp(m_old - m_new)                            # [1, N]; underflows to 0

        # per-edge max gather, kept exact in f32 (width-1, negligible MXU cost)
        m_e = jax.lax.dot_general(dst_f, m_new, (((1,), (1,)), ((), ())),
                                  preferred_element_type=f32)     # [TE, 1]
        p = jnp.exp(logit - m_e)                                  # [TE, 1]

        # fused scatter of [p*h_j | p]: the ones-column of h_j carries the denom.
        # Accumulator kept transposed ([H+1, N]) so the per-node rescale is a
        # sublane broadcast and the small operand sits on the transposed side.
        msg = (h_j * p).astype(bf16)                              # [TE, H+1]
        contrib = jax.lax.dot_general(msg, dst, (((0,), (0,)), ((), ())),
                                      preferred_element_type=f32)  # [H+1, N]
        acc_scr[...] = acc_scr[...] * scale + contrib

        @pl.when(step == pl.num_programs(0) - 1)
        def _finalize():
            acc = acc_scr[...]                                    # [H+1, N]
            denom = acc[hidden:hidden + 1, :]                     # [1, N]
            inv = jnp.where(denom > 0.0,
                            pl.reciprocal(denom, approx=True), 0.0)  # isolated nodes -> 0
            out_t = acc[:hidden, :] * inv                         # [H, N]
            if apply_relu:
                out_t = jnp.maximum(out_t, 0.0)
            if apply_proj:
                # classifier fused; lane-dense [N, 128] store (padded weights)
                out_ref[...] = (jax.lax.dot_general(
                    out_t, w_out_ref[...], (((0,), (0,)), ((), ())),
                    preferred_element_type=f32) + b_out_ref[...])
            else:
                out_ref[...] = out_t                              # transposed [H, N]

    return kernel


def _pick_edge_tile(n_edges, n_nodes):
    # Keep the per-tile [TE, N] operands (2 double-buffered bf16 one-hots plus a
    # couple of f32 temps ~ 16*N bytes per edge row) around ~16 MiB.
    # TODO(synk): halve this budget on v7x (64 MiB VMEM) and add a parallel axis.
    bytes_per_row = n_nodes * 16
    te = (16 * 2 ** 20) // max(bytes_per_row, 1)
    te = max(8, min(2048, te))
    if n_edges < te:
        te = n_edges
    te = max(8, (te // 8) * 8)
    return te


def _vmem_limit_bytes(te, n_nodes, hidden, time_dim):
    tile = te * n_nodes * (2 * 2 * 2 + 2 * 4)                 # one-hots (x2 buf) + f32 temps
    tile += te * (hidden + 1 + time_dim + 8) * 4 * 3          # h_j / msg / small per-edge cols
    nodes = n_nodes * (4 * (hidden + 1) + 8) * 4              # resident node-side scratch
    total = tile + nodes + (4 << 20)                          # weights / outputs / slack
    return int(min(max(total, 32 * 2 ** 20), 48 * 2 ** 20))


def _temporal_conv_call(x, etime, src_oh, dst_oh, w, *, te, apply_relu,
                        x_transposed, w_out=None, b_out=None):
    e_pad = etime.shape[0]
    n_nodes = src_oh.shape[1]
    hidden = w["w_lin"].shape[1] - 1
    time_dim = w["w_t"].shape[1]
    num_tiles = e_pad // te
    apply_proj = w_out is not None

    if apply_proj:
        out_shape = jax.ShapeDtypeStruct((n_nodes, w_out.shape[1]), jnp.float32)
    else:
        # conv intermediates kept transposed [H, N]: consumed by transposed-LHS
        # dot_generals downstream, and lane-dense for large N.
        out_shape = jax.ShapeDtypeStruct((hidden, n_nodes), jnp.float32)

    kernel = _make_conv_kernel(hidden=hidden, apply_relu=apply_relu,
                               apply_proj=apply_proj, x_transposed=x_transposed)

    def _full(arr):
        zeros = (0,) * arr.ndim
        return pl.BlockSpec(arr.shape, lambda e: zeros)

    in_specs = [
        pl.BlockSpec((te, 1), lambda e: (e, 0)),            # edge time tile
        pl.BlockSpec((te, n_nodes), lambda e: (e, 0)),      # src one-hot tile
        pl.BlockSpec((te, n_nodes), lambda e: (e, 0)),      # dst one-hot tile
        _full(x), _full(w["w_lin"]), _full(w["b_lin"]),
        _full(w["w_t"]), _full(w["b_t"]),
        _full(w["wa_i"]), _full(w["wa_j"]), _full(w["wa_t"]),
    ]
    args = [etime, src_oh, dst_oh, x,
            w["w_lin"], w["b_lin"], w["w_t"], w["b_t"],
            w["wa_i"], w["wa_j"], w["wa_t"]]
    if apply_proj:
        in_specs += [_full(w_out), _full(b_out)]
        args += [w_out, b_out]

    grid_spec = pltpu.PrefetchScalarGridSpec(
        num_scalar_prefetch=0,
        grid=(num_tiles,),
        in_specs=in_specs,
        out_specs=pl.BlockSpec(out_shape.shape, lambda e: (0, 0)),
        scratch_shapes=[
            pltpu.VMEM((n_nodes, hidden + 1), jnp.float32),   # h_ext (ones column)
            pltpu.VMEM((n_nodes, 1), jnp.float32),            # s_i (+ attn bias)
            pltpu.VMEM((1, n_nodes), jnp.float32),            # running per-dst max
            pltpu.VMEM((hidden + 1, n_nodes), jnp.float32),   # [messages | denom]^T acc
        ])

    return pl.pallas_call(
        kernel,
        out_shape=out_shape,
        grid_spec=grid_spec,
        compiler_params=pltpu.CompilerParams(
            dimension_semantics=("arbitrary",),
            vmem_limit_bytes=_vmem_limit_bytes(te, n_nodes, hidden, time_dim)),
    )(*args)


def _prep_conv(p):
    """Pad per-layer weights so the kernel needs no concat / bias scalar."""
    in_dim = p["w_lin"].shape[0]
    w_lin = jnp.concatenate([p["w_lin"], jnp.zeros((in_dim, 1), jnp.float32)], axis=1)
    b_lin = jnp.concatenate([p["b_lin"], jnp.ones((1, 1), jnp.float32)], axis=1)
    wa_i = jnp.concatenate([p["wa_i"], p["b_attn"].reshape(1, 1)], axis=0)  # bias folded in
    wa_j = jnp.concatenate([p["wa_j"], jnp.zeros((1, 1), jnp.float32)], axis=0)
    return dict(w_lin=w_lin, b_lin=b_lin, w_t=p["w_t"], b_t=p["b_t"],
                wa_i=wa_i, wa_j=wa_j, wa_t=p["wa_t"])


def tgat_forward(x, edge_index, edge_time, params):
    n_nodes = x.shape[0]
    n_edges = edge_index.shape[1]
    out_dim = params["cls_w"].shape[1]

    te = _pick_edge_tile(n_edges, n_nodes)
    e_pad = -(-n_edges // te) * te

    # bf16 one-hots (0/1 exact); every matmul still accumulates in f32.
    src_oh = jax.nn.one_hot(edge_index[0], n_nodes, dtype=jnp.bfloat16)   # [E, N]
    dst_oh = jax.nn.one_hot(edge_index[1], n_nodes, dtype=jnp.bfloat16)   # [E, N]
    etime = edge_time.astype(jnp.float32)
    if e_pad != n_edges:
        pad = ((0, e_pad - n_edges), (0, 0))
        src_oh = jnp.pad(src_oh, pad)   # zero rows: padded edges touch no node
        dst_oh = jnp.pad(dst_oh, pad)
        etime = jnp.pad(etime, pad)

    conv1 = _prep_conv(params["conv1"])
    conv2 = _prep_conv(params["conv2"])

    # classifier padded to a lane-dense 128-wide slab; sliced back below.
    w_cls, b_cls = params["cls_w"], params["cls_b"]
    w_cls_p = jnp.zeros((w_cls.shape[0], LANE), jnp.float32).at[:, :out_dim].set(w_cls)
    b_cls_p = jnp.zeros((1, LANE), jnp.float32).at[:, :out_dim].set(b_cls)

    # conv1 -> ReLU (fused); output kept transposed [H, N].
    h1_t = _temporal_conv_call(x, etime, src_oh, dst_oh, conv1, te=te,
                               apply_relu=True, x_transposed=False)
    # TODO(synk): F.dropout(p=0.3, training=True) not implemented (eval forward).
    out_padded = _temporal_conv_call(h1_t, etime, src_oh, dst_oh, conv2, te=te,
                                     apply_relu=False, x_transposed=True,
                                     w_out=w_cls_p, b_out=b_cls_p)
    return out_padded[:, :out_dim]


def init_linear(key, in_dim, out_dim):
    # PyTorch stores weight as [out, in]; keep it pre-transposed as [in, out].
    kw, kb = jax.random.split(key)
    bound = 1.0 / (in_dim ** 0.5)
    w = jax.random.uniform(kw, (in_dim, out_dim), jnp.float32, -bound, bound)
    b = jax.random.uniform(kb, (1, out_dim), jnp.float32, -bound, bound)
    return w, b


def init_conv_params(key, in_dim, hidden, time_dim):
    k1, k2, k3 = jax.random.split(key, 3)
    w_lin, b_lin = init_linear(k1, in_dim, hidden)
    w_t, b_t = init_linear(k2, 1, time_dim)
    w_attn, b_attn = init_linear(k3, 2 * hidden + time_dim, 1)
    return {"w_lin": w_lin, "b_lin": b_lin,
            "w_t": w_t, "b_t": b_t,
            # pre-split attn weight so the kernel never slices it
            "wa_i": w_attn[:hidden],
            "wa_j": w_attn[hidden:2 * hidden],
            "wa_t": w_attn[2 * hidden:],
            "b_attn": b_attn.reshape(1)}


if __name__ == "__main__":
    in_dim, hidden_dim, out_dim, time_dim = 8, 32, 4, 16
    n_nodes, n_edges = 16, 32

    key = jax.random.PRNGKey(0)
    kx, kt, ke1, ke2, kp1, kp2, kp3 = jax.random.split(key, 7)

    x = jax.random.normal(kx, (n_nodes, in_dim), jnp.float32)
    edge_src = jax.random.randint(ke1, (n_edges,), 0, n_nodes)
    edge_dst = jax.random.randint(ke2, (n_edges,), 0, n_nodes)
    edge_index = jnp.stack([edge_src, edge_dst], axis=0)            # [2, E]
    edge_time = jax.random.uniform(kt, (n_edges, 1), jnp.float32)   # [E, 1]

    cls_w, cls_b = init_linear(kp3, hidden_dim, out_dim)
    params = {
        "conv1": init_conv_params(kp1, in_dim, hidden_dim, time_dim),
        "conv2": init_conv_params(kp2, hidden_dim, hidden_dim, time_dim),
        "cls_w": cls_w, "cls_b": cls_b,
    }

    out = tgat_forward(x, edge_index, edge_time, params)
    jax.block_until_ready(out)
    assert out.shape == (n_nodes, out_dim)
    assert bool(jnp.all(jnp.isfinite(out)))
    print("KERNEL_OK")
</pallas_src>

<mosaic_0001>
module attributes {stable_mosaic.version = 11 : i64} {
  func.func @kernel(%arg0: i32, %arg1: memref<32x1xf32, #tpu.memory_space<vmem>>, %arg2: memref<32x16xbf16, #tpu.memory_space<vmem>>, %arg3: memref<32x16xbf16, #tpu.memory_space<vmem>>, %arg4: memref<16x8xf32, #tpu.memory_space<vmem>>, %arg5: memref<8x33xf32, #tpu.memory_space<vmem>>, %arg6: memref<1x33xf32, #tpu.memory_space<vmem>>, %arg7: memref<1x16xf32, #tpu.memory_space<vmem>>, %arg8: memref<1x16xf32, #tpu.memory_space<vmem>>, %arg9: memref<33x1xf32, #tpu.memory_space<vmem>>, %arg10: memref<33x1xf32, #tpu.memory_space<vmem>>, %arg11: memref<16x1xf32, #tpu.memory_space<vmem>>, %arg12: memref<32x16xf32, #tpu.memory_space<vmem>>, %arg13: memref<16x33xf32, #tpu.memory_space<vmem>>, %arg14: memref<16x1xf32, #tpu.memory_space<vmem>>, %arg15: memref<1x16xf32, #tpu.memory_space<vmem>>, %arg16: memref<33x16xf32, #tpu.memory_space<vmem>>) attributes {dimension_semantics = [#tpu.dimension_semantics<arbitrary>], iteration_bounds = array<i64: 1>, scalar_prefetch = 0 : i64, scratch_operands = 4 : i64, tpu.core_type = #tpu.core_type<tc>, window_params = [{transform_indices = @transform_0, window_bounds = array<i64: 32, 1>}, {transform_indices = @transform_1, window_bounds = array<i64: 32, 16>}, {transform_indices = @transform_2, window_bounds = array<i64: 32, 16>}, {pipeline_mode = #tpu.pipeline_mode<synchronous>, transform_indices = @transform_3, window_bounds = array<i64: 16, 8>}, {pipeline_mode = #tpu.pipeline_mode<synchronous>, transform_indices = @transform_4, window_bounds = array<i64: 8, 33>}, {pipeline_mode = #tpu.pipeline_mode<synchronous>, transform_indices = @transform_5, window_bounds = array<i64: 1, 33>}, {pipeline_mode = #tpu.pipeline_mode<synchronous>, transform_indices = @transform_6, window_bounds = array<i64: 1, 16>}, {pipeline_mode = #tpu.pipeline_mode<synchronous>, transform_indices = @transform_7, window_bounds = array<i64: 1, 16>}, {pipeline_mode = #tpu.pipeline_mode<synchronous>, transform_indices = @transform_8, window_bounds = array<i64: 33, 1>}, {pipeline_mode = #tpu.pipeline_mode<synchronous>, transform_indices = @transform_9, window_bounds = array<i64: 33, 1>}, {pipeline_mode = #tpu.pipeline_mode<synchronous>, transform_indices = @transform_10, window_bounds = array<i64: 16, 1>}, {pipeline_mode = #tpu.pipeline_mode<synchronous>, transform_indices = @transform_11, window_bounds = array<i64: 32, 16>}]} {
    %c0_i32 = arith.constant 0 : i32
    %0 = arith.cmpi eq, %arg0, %c0_i32 : i32
    %1 = arith.extui %0 : i1 to i32
    %c0_i32_0 = arith.constant 0 : i32
    %2 = arith.cmpi ne, %1, %c0_i32_0 : i32
    scf.if %2 {
      %c0_38 = arith.constant 0 : index
      %c0_39 = arith.constant 0 : index
      %59 = vector.load %arg4[%c0_38, %c0_39] : memref<16x8xf32, #tpu.memory_space<vmem>>, vector<16x8xf32>
      %c0_40 = arith.constant 0 : index
      %c0_41 = arith.constant 0 : index
      %60 = vector.load %arg5[%c0_40, %c0_41] : memref<8x33xf32, #tpu.memory_space<vmem>>, vector<8x33xf32>
      %cst_42 = arith.constant dense<0.000000e+00> : vector<16x33xf32>
      %61 = tpu.matmul %59, %60, %cst_42 {dimension_numbers = #tpu.dot_dimension_numbers<[1], [0], [0], [1], [0, 0, 1, 1], [], []>} : vector<16x8xf32>, vector<8x33xf32>, vector<16x33xf32> -> vector<16x33xf32>
      %c0_43 = arith.constant 0 : index
      %c0_44 = arith.constant 0 : index
      %62 = vector.load %arg6[%c0_43, %c0_44] : memref<1x33xf32, #tpu.memory_space<vmem>>, vector<1x33xf32>
      %63 = vector.broadcast %62 : vector<1x33xf32> to vector<16x33xf32>
      %64 = arith.addf %61, %63 : vector<16x33xf32>
      %c0_45 = arith.constant 0 : index
      %c0_46 = arith.constant 0 : index
      %65 = vector.load %arg13[%c0_45, %c0_46] : memref<16x33xf32, #tpu.memory_space<vmem>>, vector<16x33xf32>
      tpu.vector_store %arg13[%c0_45, %c0_46], %64 {strides = array<i32>} : memref<16x33xf32, #tpu.memory_space<vmem>>, vector<16x33xf32>,
      %c0_47 = arith.constant 0 : index
      %c0_48 = arith.constant 0 : index
      %66 = vector.load %arg9[%c0_47, %c0_48] : memref<33x1xf32, #tpu.memory_space<vmem>>, vector<33x1xf32>
      %cst_49 = arith.constant dense<0.000000e+00> : vector<16x1xf32>
      %67 = tpu.matmul %64, %66, %cst_49 {dimension_numbers = #tpu.dot_dimension_numbers<[1], [0], [0], [1], [0, 0, 1, 1], [], []>} : vector<16x33xf32>, vector<33x1xf32>, vector<16x1xf32> -> vector<16x1xf32>
      %c0_50 = arith.constant 0 : index
      %c0_51 = arith.constant 0 : index
      %68 = vector.load %arg14[%c0_50, %c0_51] : memref<16x1xf32, #tpu.memory_space<vmem>>, vector<16x1xf32>
      tpu.vector_store %arg14[%c0_50, %c0_51], %67 {strides = array<i32>} : memref<16x1xf32, #tpu.memory_space<vmem>>, vector<16x1xf32>,
      %cst_52 = arith.constant -1.000000e+30 : f32
      %69 = vector.broadcast %cst_52 : f32 to vector<1x16xf32>
      %c0_53 = arith.constant 0 : index
      %c0_54 = arith.constant 0 : index
      %70 = vector.load %arg15[%c0_53, %c0_54] : memref<1x16xf32, #tpu.memory_space<vmem>>, vector<1x16xf32>
      tpu.vector_store %arg15[%c0_53, %c0_54], %69 {strides = array<i32>} : memref<1x16xf32, #tpu.memory_space<vmem>>, vector<1x16xf32>,
      %cst_55 = arith.constant 0.000000e+00 : f32
      %71 = vector.broadcast %cst_55 : f32 to vector<33x16xf32>
      %c0_56 = arith.constant 0 : index
      %c0_57 = arith.constant 0 : index
      %72 = vector.load %arg16[%c0_56, %c0_57] : memref<33x16xf32, #tpu.memory_space<vmem>>, vector<33x16xf32>
      tpu.vector_store %arg16[%c0_56, %c0_57], %71 {strides = array<i32>} : memref<33x16xf32, #tpu.memory_space<vmem>>, vector<33x16xf32>,
    } else {
    }
    %c0 = arith.constant 0 : index
    %c0_1 = arith.constant 0 : index
    %3 = vector.load %arg13[%c0, %c0_1] : memref<16x33xf32, #tpu.memory_space<vmem>>, vector<16x33xf32>
    %c0_2 = arith.constant 0 : index
    %c0_3 = arith.constant 0 : index
    %4 = vector.load %arg2[%c0_2, %c0_3] : memref<32x16xbf16, #tpu.memory_space<vmem>>, vector<32x16xbf16>
    %c0_4 = arith.constant 0 : index
    %c0_5 = arith.constant 0 : index
    %5 = vector.load %arg3[%c0_4, %c0_5] : memref<32x16xbf16, #tpu.memory_space<vmem>>, vector<32x16xbf16>
    %6 = arith.extf %5 : vector<32x16xbf16> to vector<32x16xf32>
    %c0_6 = arith.constant 0 : index
    %c0_7 = arith.constant 0 : index
    %7 = vector.load %arg1[%c0_6, %c0_7] : memref<32x1xf32, #tpu.memory_space<vmem>>, vector<32x1xf32>
    %c0_8 = arith.constant 0 : index
    %c0_9 = arith.constant 0 : index
    %8 = vector.load %arg7[%c0_8, %c0_9] : memref<1x16xf32, #tpu.memory_space<vmem>>, vector<1x16xf32>
    %9 = vector.broadcast %7 : vector<32x1xf32> to vector<32x16xf32>
    %10 = vector.broadcast %8 : vector<1x16xf32> to vector<32x16xf32>
    %11 = arith.mulf %9, %10 : vector<32x16xf32>
    %c0_10 = arith.constant 0 : index
    %c0_11 = arith.constant 0 : index
    %12 = vector.load %arg8[%c0_10, %c0_11] : memref<1x16xf32, #tpu.memory_space<vmem>>, vector<1x16xf32>
    %13 = vector.broadcast %12 : vector<1x16xf32> to vector<32x16xf32>
    %14 = arith.addf %11, %13 : vector<32x16xf32>
    %15 = math.sin %14 : vector<32x16xf32>
    %16 = arith.truncf %3 : vector<16x33xf32> to vector<16x33xbf16>
    %cst = arith.constant dense<0.000000e+00> : vector<32x33xf32>
    %17 = tpu.matmul %4, %16, %cst {dimension_numbers = #tpu.dot_dimension_numbers<[1], [0], [0], [1], [0, 0, 1, 1], [], []>} : vector<32x16xbf16>, vector<16x33xbf16>, vector<32x33xf32> -> vector<32x33xf32>
    %c0_12 = arith.constant 0 : index
    %c0_13 = arith.constant 0 : index
    %18 = vector.load %arg14[%c0_12, %c0_13] : memref<16x1xf32, #tpu.memory_space<vmem>>, vector<16x1xf32>
    %cst_14 = arith.constant dense<0.000000e+00> : vector<32x1xf32>
    %19 = tpu.matmul %6, %18, %cst_14 {dimension_numbers = #tpu.dot_dimension_numbers<[1], [0], [0], [1], [0, 0, 1, 1], [], []>} : vector<32x16xf32>, vector<16x1xf32>, vector<32x1xf32> -> vector<32x1xf32>
    %c0_15 = arith.constant 0 : index
    %c0_16 = arith.constant 0 : index
    %20 = vector.load %arg10[%c0_15, %c0_16] : memref<33x1xf32, #tpu.memory_space<vmem>>, vector<33x1xf32>
    %cst_17 = arith.constant dense<0.000000e+00> : vector<32x1xf32>
    %21 = tpu.matmul %17, %20, %cst_17 {dimension_numbers = #tpu.dot_dimension_numbers<[1], [0], [0], [1], [0, 0, 1, 1], [], []>} : vector<32x33xf32>, vector<33x1xf32>, vector<32x1xf32> -> vector<32x1xf32>
    %22 = arith.addf %19, %21 : vector<32x1xf32>
    %c0_18 = arith.constant 0 : index
    %c0_19 = arith.constant 0 : index
    %23 = vector.load %arg11[%c0_18, %c0_19] : memref<16x1xf32, #tpu.memory_space<vmem>>, vector<16x1xf32>
    %cst_20 = arith.constant dense<0.000000e+00> : vector<32x1xf32>
    %24 = tpu.matmul %15, %23, %cst_20 {dimension_numbers = #tpu.dot_dimension_numbers<[1], [0], [0], [1], [0, 0, 1, 1], [], []>} : vector<32x16xf32>, vector<16x1xf32>, vector<32x1xf32> -> vector<32x1xf32>
    %25 = arith.addf %22, %24 : vector<32x1xf32>
    %cst_21 = arith.constant 0.000000e+00 : f32
    %26 = vector.broadcast %cst_21 : f32 to vector<32x1xf32>
    %27 = arith.cmpf oge, %25, %26 : vector<32x1xf32>
    %cst_22 = arith.constant 0.00999999977 : f32
    %28 = vector.broadcast %cst_22 : f32 to vector<32x1xf32>
    %29 = arith.mulf %28, %25 : vector<32x1xf32>
    %30 = arith.select %27, %25, %29 : vector<32x1xi1>, vector<32x1xf32>
    %cst_23 = arith.constant 0.000000e+00 : f32
    %31 = vector.broadcast %cst_23 : f32 to vector<32x16xf32>
    %32 = arith.cmpf ogt, %6, %31 : vector<32x16xf32>
    %cst_24 = arith.constant -1.000000e+30 : f32
    %33 = vector.shape_cast %30 : vector<32x1xf32> to vector<32x1xf32>
    %34 = vector.broadcast %33 : vector<32x1xf32> to vector<32x16xf32>
    %35 = vector.broadcast %cst_24 : f32 to vector<32x16xf32>
    %36 = arith.select %32, %34, %35 : vector<32x16xi1>, vector<32x16xf32>
    %cst_25 = arith.constant dense<0xFF800000> : vector<16xf32>
    %37 = vector.multi_reduction <maximumf>, %36, %cst_25 [0] : vector<32x16xf32> to vector<16xf32>
    %38 = vector.shape_cast %37 : vector<16xf32> to vector<1x16xf32>
    %c0_26 = arith.constant 0 : index
    %c0_27 = arith.constant 0 : index
    %39 = vector.load %arg15[%c0_26, %c0_27] : memref<1x16xf32, #tpu.memory_space<vmem>>, vector<1x16xf32>
    %40 = arith.maximumf %39, %38 : vector<1x16xf32>
    %c0_28 = arith.constant 0 : index
    %c0_29 = arith.constant 0 : index
    %41 = vector.load %arg15[%c0_28, %c0_29] : memref<1x16xf32, #tpu.memory_space<vmem>>, vector<1x16xf32>
    tpu.vector_store %arg15[%c0_28, %c0_29], %40 {strides = array<i32>} : memref<1x16xf32, #tpu.memory_space<vmem>>, vector<1x16xf32>,
    %42 = arith.subf %39, %40 : vector<1x16xf32>
    %43 = math.exp %42 : vector<1x16xf32>
    %cst_30 = arith.constant dense<0.000000e+00> : vector<32x1xf32>
    %44 = tpu.matmul %6, %40, %cst_30 {dimension_numbers = #tpu.dot_dimension_numbers<[1], [1], [0], [0], [0, 0, 1, 0], [], []>} : vector<32x16xf32>, vector<1x16xf32>, vector<32x1xf32> -> vector<32x1xf32>
    %45 = arith.subf %30, %44 : vector<32x1xf32>
    %46 = math.exp %45 : vector<32x1xf32>
    %47 = vector.broadcast %46 : vector<32x1xf32> to vector<32x33xf32>
    %48 = arith.mulf %17, %47 : vector<32x33xf32>
    %49 = arith.truncf %48 : vector<32x33xf32> to vector<32x33xbf16>
    %cst_31 = arith.constant dense<0.000000e+00> : vector<33x16xf32>
    %50 = tpu.matmul %49, %5, %cst_31 {dimension_numbers = #tpu.dot_dimension_numbers<[0], [0], [1], [1], [0, 1, 1, 1], [], []>} : vector<32x33xbf16>, vector<32x16xbf16>, vector<33x16xf32> -> vector<33x16xf32>
    %c0_32 = arith.constant 0 : index
    %c0_33 = arith.constant 0 : index
    %51 = vector.load %arg16[%c0_32, %c0_33] : memref<33x16xf32, #tpu.memory_space<vmem>>, vector<33x16xf32>
    %52 = vector.broadcast %43 : vector<1x16xf32> to vector<33x16xf32>
    %53 = arith.mulf %51, %52 : vector<33x16xf32>
    %54 = arith.addf %53, %50 : vector<33x16xf32>
    %c0_34 = arith.constant 0 : index
    %c0_35 = arith.constant 0 : index
    %55 = vector.load %arg16[%c0_34, %c0_35] : memref<33x16xf32, #tpu.memory_space<vmem>>, vector<33x16xf32>
    tpu.vector_store %arg16[%c0_34, %c0_35], %54 {strides = array<i32>} : memref<33x16xf32, #tpu.memory_space<vmem>>, vector<33x16xf32>,
    %c0_i32_36 = arith.constant 0 : i32
    %56 = arith.cmpi eq, %arg0, %c0_i32_36 : i32
    %57 = arith.extui %56 : i1 to i32
    %c0_i32_37 = arith.constant 0 : i32
    %58 = arith.cmpi ne, %57, %c0_i32_37 : i32
    scf.if %58 {
      %c0_38 = arith.constant 0 : index
      %c0_39 = arith.constant 0 : index
      %59 = vector.load %arg16[%c0_38, %c0_39] : memref<33x16xf32, #tpu.memory_space<vmem>>, vector<33x16xf32>
      %60 = vector.extract_strided_slice %59 {offsets = [32, 0], sizes = [1, 16], strides = [1, 1]} : vector<33x16xf32> to vector<1x16xf32>
      %cst_40 = arith.constant 0.000000e+00 : f32
      %61 = vector.broadcast %cst_40 : f32 to vector<1x16xf32>
      %62 = arith.cmpf ogt, %60, %61 : vector<1x16xf32>
      %63 = tpu.reciprocal %60 {approx = true} : vector<1x16xf32> -> vector<1x16xf32>
      %cst_41 = arith.constant 0.000000e+00 : f32
      %64 = vector.broadcast %cst_41 : f32 to vector<1x16xf32>
      %65 = arith.select %62, %63, %64 : vector<1x16xi1>, vector<1x16xf32>
      %66 = vector.extract_strided_slice %59 {offsets = [0, 0], sizes = [32, 16], strides = [1, 1]} : vector<33x16xf32> to vector<32x16xf32>
      %67 = vector.broadcast %65 : vector<1x16xf32> to vector<32x16xf32>
      %68 = arith.mulf %66, %67 : vector<32x16xf32>
      %cst_42 = arith.constant 0.000000e+00 : f32
      %69 = vector.broadcast %cst_42 : f32 to vector<32x16xf32>
      %70 = arith.maximumf %68, %69 : vector<32x16xf32>
      %c0_43 = arith.constant 0 : index
      %c0_44 = arith.constant 0 : index
      %71 = vector.load %arg12[%c0_43, %c0_44] : memref<32x16xf32, #tpu.memory_space<vmem>>, vector<32x16xf32>
      tpu.vector_store %arg12[%c0_43, %c0_44], %70 {strides = array<i32>} : memref<32x16xf32, #tpu.memory_space<vmem>>, vector<32x16xf32>,
    } else {
    }
    return
  }
  func.func @transform_0(%arg0: i32) -> (i32, i32) {
    %c0_i32 = arith.constant 0 : i32
    %c0_i32_0 = arith.constant 0 : i32
    return %arg0, %c0_i32 : i32, i32
  }
  func.func @transform_1(%arg0: i32) -> (i32, i32) {
    %c0_i32 = arith.constant 0 : i32
    %c0_i32_0 = arith.constant 0 : i32
    return %arg0, %c0_i32 : i32, i32
  }
  func.func @transform_2(%arg0: i32) -> (i32, i32) {
    %c0_i32 = arith.constant 0 : i32
    %c0_i32_0 = arith.constant 0 : i32
    return %arg0, %c0_i32 : i32, i32
  }
  func.func @transform_3(%arg0: i32) -> (i32, i32) {
    %c0_i32 = arith.constant 0 : i32
    %c0_i32_0 = arith.constant 0 : i32
    %c0_i32_1 = arith.constant 0 : i32
    return %c0_i32, %c0_i32_0 : i32, i32
  }
  func.func @transform_4(%arg0: i32) -> (i32, i32) {
    %c0_i32 = arith.constant 0 : i32
    %c0_i32_0 = arith.constant 0 : i32
    %c0_i32_1 = arith.constant 0 : i32
    return %c0_i32, %c0_i32_0 : i32, i32
  }
  func.func @transform_5(%arg0: i32) -> (i32, i32) {
    %c0_i32 = arith.constant 0 : i32
    %c0_i32_0 = arith.constant 0 : i32
    %c0_i32_1 = arith.constant 0 : i32
    return %c0_i32, %c0_i32_0 : i32, i32
  }
  func.func @transform_6(%arg0: i32) -> (i32, i32) {
    %c0_i32 = arith.constant 0 : i32
    %c0_i32_0 = arith.constant 0 : i32
    %c0_i32_1 = arith.constant 0 : i32
    return %c0_i32, %c0_i32_0 : i32, i32
  }
  func.func @transform_7(%arg0: i32) -> (i32, i32) {
    %c0_i32 = arith.constant 0 : i32
    %c0_i32_0 = arith.constant 0 : i32
    %c0_i32_1 = arith.constant 0 : i32
    return %c0_i32, %c0_i32_0 : i32, i32
  }
  func.func @transform_8(%arg0: i32) -> (i32, i32) {
    %c0_i32 = arith.constant 0 : i32
    %c0_i32_0 = arith.constant 0 : i32
    %c0_i32_1 = arith.constant 0 : i32
    return %c0_i32, %c0_i32_0 : i32, i32
  }
  func.func @transform_9(%arg0: i32) -> (i32, i32) {
    %c0_i32 = arith.constant 0 : i32
    %c0_i32_0 = arith.constant 0 : i32
    %c0_i32_1 = arith.constant 0 : i32
    return %c0_i32, %c0_i32_0 : i32, i32
  }
  func.func @transform_10(%arg0: i32) -> (i32, i32) {
    %c0_i32 = arith.constant 0 : i32
    %c0_i32_0 = arith.constant 0 : i32
    %c0_i32_1 = arith.constant 0 : i32
    return %c0_i32, %c0_i32_0 : i32, i32
  }
  func.func @transform_11(%arg0: i32) -> (i32, i32) {
    %c0_i32 = arith.constant 0 : i32
    %c0_i32_0 = arith.constant 0 : i32
    %c0_i32_1 = arith.constant 0 : i32
    return %c0_i32, %c0_i32_0 : i32, i32
  }
}

</mosaic_0001>

<llo_original>
// kernel: tpu_custom_call.1
$region0: #{tpu_custom_call.1}
  #allocation0 [shape = 'u32[]', space=smem, size = 0x4, offset = 0x4, fixed_abs, tag = 'smem constant byte address 0x4 - core index']
  #allocation1 [shape = 'u32[144,128]{1,0:T(1,128)}', space=vmem, size = 0x12000, scoped, tag = 'internal scratch']
  #allocation2 [shape = 'f32[16,33]{1,0:T(8,128)}', space=vmem, size = 0x2000, scoped, tag = 'scratch operand']
  #allocation3 [shape = 'f32[16,1]{1,0:T(8,128)}', space=vmem, size = 0x2000, scoped, tag = 'scratch operand']
  #allocation4 [shape = 'f32[1,16]{1,0:T(1,128)}', space=vmem, size = 0x200, scoped, tag = 'scratch operand']
  #allocation5 [shape = 'f32[33,16]{1,0:T(8,128)}', space=vmem, size = 0x5000, scoped, tag = 'scratch operand']
  %s0 = inlined_call_operand.vmem [shape: f32[32,1], index: 0, kind: input, shape index: {}]
  %s1 = inlined_call_operand.vmem [shape: bf16[32,16], index: 1, kind: input, shape index: {}]
  %s2 = inlined_call_operand.vmem [shape: bf16[32,16], index: 2, kind: input, shape index: {}]
  %s3 = inlined_call_operand.vmem [shape: f32[16,8], index: 3, kind: input, shape index: {}]
  %s4 = inlined_call_operand.vmem [shape: f32[8,33], index: 4, kind: input, shape index: {}]
  %s5 = inlined_call_operand.vmem [shape: f32[1,33], index: 5, kind: input, shape index: {}]
  %s6 = inlined_call_operand.vmem [shape: f32[1,16], index: 6, kind: input, shape index: {}]
  %s7 = inlined_call_operand.vmem [shape: f32[1,16], index: 7, kind: input, shape index: {}]
  %s8 = inlined_call_operand.vmem [shape: f32[33,1], index: 8, kind: input, shape index: {}]
  %s9 = inlined_call_operand.vmem [shape: f32[33,1], index: 9, kind: input, shape index: {}]
  %s10 = inlined_call_operand.vmem [shape: f32[16,1], index: 10, kind: input, shape index: {}]
  %s11 = inlined_call_operand.vmem [shape: f32[32,16], index: 11, kind: output, shape index: {}]
  %s12 = sld [smem:[#allocation0]]
  $region62: #{tpu_custom_call.1} parent=0
    _
  %s14 = ssub.s32 1, %s12
  %s15 = scalar_select 0, %s14, %s12
  // Predicated region
  $region2: #{tpu_custom_call.1} parent=0 // pred_check
    _
  $region3: #{tpu_custom_call.1} parent=0 // pred_check_branch
    %17 = sbr.rel (0) target = $region5
  $region4: #{tpu_custom_call.1} parent=0 // pred_region
    _
  $region5: #{tpu_custom_call.1} parent=0 // pred_fallthru
    _
  // Predicated region
  $region6: #{tpu_custom_call.1} parent=0 // pred_check
    _
  $region7: #{tpu_custom_call.1} parent=0 // pred_check_branch
    %19 = sbr.rel (0) target = $region9
  $region8: #{tpu_custom_call.1} parent=0 // pred_region
    _
  $region9: #{tpu_custom_call.1} parent=0 // pred_fallthru
    _
  // Predicated region
  $region10: #{tpu_custom_call.1} parent=0 // pred_check
    _
  $region11: #{tpu_custom_call.1} parent=0 // pred_check_branch
    %21 = sbr.rel (0) target = $region13
  $region12: #{tpu_custom_call.1} parent=0 // pred_region
    _
  $region13: #{tpu_custom_call.1} parent=0 // pred_fallthru
    _
  // Predicated region
  $region14: #{tpu_custom_call.1} parent=0 // pred_check
    _
  $region15: #{tpu_custom_call.1} parent=0 // pred_check_branch
    %23 = sbr.rel (0) target = $region17
  $region16: #{tpu_custom_call.1} parent=0 // pred_region
    _
  $region17: #{tpu_custom_call.1} parent=0 // pred_fallthru
    _
  // Predicated region
  $region18: #{tpu_custom_call.1} parent=0 // pred_check
    _
  $region19: #{tpu_custom_call.1} parent=0 // pred_check_branch
    %25 = sbr.rel (0) target = $region21
  $region20: #{tpu_custom_call.1} parent=0 // pred_region
    _
  $region21: #{tpu_custom_call.1} parent=0 // pred_fallthru
    _
  // Predicated region
  $region22: #{tpu_custom_call.1} parent=0 // pred_check
    _
  $region23: #{tpu_custom_call.1} parent=0 // pred_check_branch
    %27 = sbr.rel (0) target = $region25
  $region24: #{tpu_custom_call.1} parent=0 // pred_region
    _
  $region25: #{tpu_custom_call.1} parent=0 // pred_fallthru
    _
  // Predicated region
  $region26: #{tpu_custom_call.1} parent=0 // pred_check
    _
  $region27: #{tpu_custom_call.1} parent=0 // pred_check_branch
    %29 = sbr.rel (0) target = $region29
  $region28: #{tpu_custom_call.1} parent=0 // pred_region
    _
  $region29: #{tpu_custom_call.1} parent=0 // pred_fallthru
    _
  // Predicated region
  $region30: #{tpu_custom_call.1} parent=0 // pred_check
    _
  $region31: #{tpu_custom_call.1} parent=0 // pred_check_branch
    %31 = sbr.rel (0) target = $region33
  $region32: #{tpu_custom_call.1} parent=0 // pred_region
    _
  $region33: #{tpu_custom_call.1} parent=0 // pred_fallthru
    _
  // Predicated region
  $region34: #{tpu_custom_call.1} parent=0 // pred_check
    _
  $region35: #{tpu_custom_call.1} parent=0 // pred_check_branch
    %33 = sbr.rel (0) target = $region37
  $region36: #{tpu_custom_call.1} parent=0 // pred_region
    _
  $region37: #{tpu_custom_call.1} parent=0 // pred_fallthru
    _
  // Predicated region
  $region38: #{tpu_custom_call.1} parent=0 // pred_check
    _
  $region39: #{tpu_custom_call.1} parent=0 // pred_check_branch
    %35 = sbr.rel (0) target = $region41
  $region40: #{tpu_custom_call.1} parent=0 // pred_region
    _
  $region41: #{tpu_custom_call.1} parent=0 // pred_fallthru
    _
  // Predicated region
  $region42: #{tpu_custom_call.1} parent=0 // pred_check
    _
  $region43: #{tpu_custom_call.1} parent=0 // pred_check_branch
    %37 = sbr.rel (0) target = $region45
  $region44: #{tpu_custom_call.1} parent=0 // pred_region
    _
  $region45: #{tpu_custom_call.1} parent=0 // pred_fallthru
    _
  %p39 = scmp.eq.s32.totalorder 0, 0
  // Predicated region
  $region46: #{tpu_custom_call.1} parent=0 // pred_check
    %p40 = pneg %p39
  $region47: #{tpu_custom_call.1} parent=0 // pred_check_branch
    %42 = sbr.rel (%p40) target = $region49
  $region48: #{tpu_custom_call.1} parent=0 // pred_region
    %v43 = vld [vmem:[%s3] sm:$0xff]
    %v44 = vld [vmem:[%s3 + $0x8] sm:$0xff]
    %v45 = vld [vmem:[%s4] sm:$0xff]
    %v46 = vld [vmem:[%s5] sm:$0x1]
    %v48 = vlaneseq
    %v49 = vshrl.u32 %v48, 7
    %v50 = vsub.s32 0, %v49
    %v51 = vrot.slane %v46, %v50
    %vm53 = vcmask 64512
    %v55 = vsel %vm53, %v43, 0
    %v58 = vsel %vm53, %v44, 0
    %60 = vmatprep.subr.mxu0 0.0
    %61 = vmatpush1.msra.mxu0 0.0
    %62 = vmatprep.subr.mxu0 0.0
    %63 = vmatpush1.msra.mxu0 0.0
    %64 = vmatprep.subr.mxu0 0.0
    %65 = vmatpush1.msra.mxu0 0.0
    %66 = vmatprep.subr.mxu0 0.0
    %67 = vmatpush1.msra.mxu0 0.0
    %68 = vmatprep.subr.mxu0 0.0
    %69 = vmatpush1.msra.mxu0 0.0
    %70 = vmatprep.subr.mxu0 0.0
    %71 = vmatpush1.msra.mxu0 0.0
    %72 = vmatprep.subr.mxu0 0.0
    %73 = vmatpush1.msra.mxu0 0.0
    %74 = vmatprep.subr.mxu0 0.0
    %75 = vmatpush1.msra.mxu0 0.0
    %76 = vmatprep.subr.mxu0 0.0
    %77 = vmatpush1.msra.mxu0 0.0
    %78 = vmatprep.subr.mxu0 0.0
    %79 = vmatpush1.msra.mxu0 0.0
    %80 = vmatprep.subr.mxu0 0.0
    %81 = vmatpush1.msra.mxu0 0.0
    %82 = vmatprep.subr.mxu0 0.0
    %83 = vmatpush1.msra.mxu0 0.0
    %84 = vmatprep.subr.mxu0 0.0
    %85 = vmatpush1.msra.mxu0 0.0
    %86 = vmatprep.subr.mxu0 0.0
    %87 = vmatpush1.msra.mxu0 0.0
    %88 = vmatprep.subr.mxu0 0.0
    %89 = vmatpush1.msra.mxu0 0.0
    %90 = vmatprep.subr.mxu0 0.0
    %91 = vmatpush1.msra.mxu0 %v45
    %92 = vmatprep.subr.mxu0 0.0
    %93 = vmatpush2.msra.mxu0 0.0
    %94 = vmatprep.subr.mxu0 0.0
    %95 = vmatpush2.msra.mxu0 0.0
    %96 = vmatprep.subr.mxu0 0.0
    %97 = vmatpush2.msra.mxu0 0.0
    %98 = vmatprep.subr.mxu0 0.0
    %99 = vmatpush2.msra.mxu0 0.0
    %100 = vmatprep.subr.mxu0 0.0
    %101 = vmatpush2.msra.mxu0 0.0
    %102 = vmatprep.subr.mxu0 0.0
    %103 = vmatpush2.msra.mxu0 0.0
    %104 = vmatprep.subr.mxu0 0.0
    %105 = vmatpush2.msra.mxu0 0.0
    %106 = vmatprep.subr.mxu0 0.0
    %107 = vmatpush2.msra.mxu0 0.0
    %108 = vmatprep.subr.mxu0 0.0
    %109 = vmatpush2.msra.mxu0 0.0
    %110 = vmatprep.subr.mxu0 0.0
    %111 = vmatpush2.msra.mxu0 0.0
    %112 = vmatprep.subr.mxu0 0.0
    %113 = vmatpush2.msra.mxu0 0.0
    %114 = vmatprep.subr.mxu0 0.0
    %115 = vmatpush2.msra.mxu0 0.0
    %116 = vmatprep.subr.mxu0 0.0
    %117 = vmatpush2.msra.mxu0 0.0
    %118 = vmatprep.subr.mxu0 0.0
    %119 = vmatpush2.msra.mxu0 0.0
    %120 = vmatprep.subr.mxu0 0.0
    %121 = vmatpush2.msra.mxu0 0.0
    %122 = vmatprep.subr.mxu0 0.0
    %123 = vmatpush2.msra.mxu0 0.0
    %124 = vmatprep.mubr.f32.mxu0 0.0
    %125 = vmatmul.mubr.f32.gmra.mxu0 %v55
    %v126 = vpop.f32.mrf.mxu0
    %v127 = vadd.f32 %v51, %v126
    %v128 = vpop.f32.mrf.mxu0
    %129 = vmatprep.mubr.f32.mxu0 0.0
    %130 = vmatmul.mubr.f32.gmra.mxu0 %v58
    %v131 = vpop.f32.mrf.mxu0
    %v132 = vadd.f32 %v51, %v131
    %v133 = vpop.f32.mrf.mxu0
    %134 = vdwg.mxu0
    %vm135 = vcmask 269312
    %136 = vst.msk [vmem:[#allocation2] sm:$0xff] %vm135, %v127
    %137 = vst.msk [vmem:[#allocation2 + $0x8] sm:$0xff] %vm135, %v132
    %v138 = vld [vmem:[%s8] sm:$0xff]
    %v139 = vld [vmem:[%s8 + $0x8] sm:$0xff]
    %v140 = vld [vmem:[%s8 + $0x10] sm:$0xff]
    %v141 = vld [vmem:[%s8 + $0x18] sm:$0xff]
    %v142 = vld [vmem:[%s8 + $0x20] sm:$0x1]
    %v144 = vsel %vm135, %v127, 0
    %v147 = vsel %vm135, %v132, 0
    %vm149 = vcmask 1040384
    %v151 = vsel %vm149, %v142, 0
    %153 = vmatprep.subr.mxu0 0.0
    %154 = vmatpush1.msra.mxu0 0.0
    %155 = vmatprep.subr.mxu0 0.0
    %156 = vmatpush1.msra.mxu0 0.0
    %157 = vmatprep.subr.mxu0 0.0
    %158 = vmatpush1.msra.mxu0 0.0
    %159 = vmatprep.subr.mxu0 0.0
    %160 = vmatpush1.msra.mxu0 0.0
    %161 = vmatprep.subr.mxu0 0.0
    %162 = vmatpush1.msra.mxu0 0.0
    %163 = vmatprep.subr.mxu0 0.0
    %164 = vmatpush1.msra.mxu0 0.0
    %165 = vmatprep.subr.mxu0 0.0
    %166 = vmatpush1.msra.mxu0 0.0
    %167 = vmatprep.subr.mxu0 0.0
    %168 = vmatpush1.msra.mxu0 0.0
    %169 = vmatprep.subr.mxu0 0.0
    %170 = vmatpush1.msra.mxu0 0.0
    %171 = vmatprep.subr.mxu0 0.0
    %172 = vmatpush1.msra.mxu0 0.0
    %173 = vmatprep.subr.mxu0 0.0
    %174 = vmatpush1.msra.mxu0 0.0
    %175 = vmatprep.subr.mxu0 0.0
    %176 = vmatpush1.msra.mxu0 %v151
    %177 = vmatprep.subr.mxu0 0.0
    %178 = vmatpush1.msra.mxu0 %v141
    %179 = vmatprep.subr.mxu0 0.0
    %180 = vmatpush1.msra.mxu0 %v140
    %181 = vmatprep.subr.mxu0 0.0
    %182 = vmatpush1.msra.mxu0 %v139
    %183 = vmatprep.subr.mxu0 0.0
    %184 = vmatpush1.msra.mxu0 %v138
    %185 = vmatprep.subr.mxu0 0.0
    %186 = vmatpush2.msra.mxu0 0.0
    %187 = vmatprep.subr.mxu0 0.0
    %188 = vmatpush2.msra.mxu0 0.0
    %189 = vmatprep.subr.mxu0 0.0
    %190 = vmatpush2.msra.mxu0 0.0
    %191 = vmatprep.subr.mxu0 0.0
    %192 = vmatpush2.msra.mxu0 0.0
    %193 = vmatprep.subr.mxu0 0.0
    %194 = vmatpush2.msra.mxu0 0.0
    %195 = vmatprep.subr.mxu0 0.0
    %196 = vmatpush2.msra.mxu0 0.0
    %197 = vmatprep.subr.mxu0 0.0
    %198 = vmatpush2.msra.mxu0 0.0
    %199 = vmatprep.subr.mxu0 0.0
    %200 = vmatpush2.msra.mxu0 0.0
    %201 = vmatprep.subr.mxu0 0.0
    %202 = vmatpush2.msra.mxu0 0.0
    %203 = vmatprep.subr.mxu0 0.0
    %204 = vmatpush2.msra.mxu0 0.0
    %205 = vmatprep.subr.mxu0 0.0
    %206 = vmatpush2.msra.mxu0 0.0
    %207 = vmatprep.subr.mxu0 0.0
    %208 = vmatpush2.msra.mxu0 0.0
    %209 = vmatprep.subr.mxu0 0.0
    %210 = vmatpush2.msra.mxu0 0.0
    %211 = vmatprep.subr.mxu0 0.0
    %212 = vmatpush2.msra.mxu0 0.0
    %213 = vmatprep.subr.mxu0 0.0
    %214 = vmatpush2.msra.mxu0 0.0
    %215 = vmatprep.subr.mxu0 0.0
    %216 = vmatpush2.msra.mxu0 0.0
    %217 = vmatprep.mubr.f32.mxu0 0.0
    %218 = vmatmul.mubr.f32.gmra.mxu0 %v144
    %v219 = vpop.f32.mrf.mxu0
    %v220 = vadd.f32 0.0, %v219
    %v221 = vpop.f32.mrf.mxu0
    %222 = vmatprep.mubr.f32.mxu0 0.0
    %223 = vmatmul.mubr.f32.gmra.mxu0 %v147
    %v224 = vpop.f32.mrf.mxu0
    %v225 = vadd.f32 0.0, %v224
    %v226 = vpop.f32.mrf.mxu0
    %227 = vdwg.mxu0
    %vm228 = vcmask 7168
    %229 = vst.msk [vmem:[#allocation3] sm:$0xff] %vm228, %v220
    %230 = vst.msk [vmem:[#allocation3 + $0x8] sm:$0xff] %vm228, %v225
    %vm231 = vcmask 122880
    %232 = vst.msk [vmem:[#allocation4] sm:$0x1] %vm231, -1e+30
    %vm233 = vcmask 130048
    %234 = vst.msk [vmem:[#allocation5] sm:$0xff] %vm233, 0.0
    %235 = vst.msk [vmem:[#allocation5 + $0x8] sm:$0xff] %vm233, 0.0
    %236 = vst.msk [vmem:[#allocation5 + $0x10] sm:$0xff] %vm233, 0.0
    %237 = vst.msk [vmem:[#allocation5 + $0x18] sm:$0xff] %vm233, 0.0
    %238 = vst.msk [vmem:[#allocation5 + $0x20] sm:$0x1] %vm231, 0.0
  $region49: #{tpu_custom_call.1} parent=0 // pred_fallthru
    _
  %v239 = vld [vmem:[#allocation2] sm:$0xff]
  %v240 = vld [vmem:[#allocation2 + $0x8] sm:$0xff]
  %v241 = vld [vmem:[%s1] sm:$0xf]
  %v242 = vld [vmem:[%s1 + $0x4] sm:$0xf]
  %v243 = vld [vmem:[%s1 + $0x8] sm:$0xf]
  %v244 = vld [vmem:[%s1 + $0xc] sm:$0xf]
  %v245 = vld [vmem:[%s2] sm:$0xf]
  %v246 = vld [vmem:[%s2 + $0x4] sm:$0xf]
  %v247 = vld [vmem:[%s2 + $0x8] sm:$0xf]
  %v248 = vld [vmem:[%s2 + $0xc] sm:$0xf]
  %v249 = vunpack.c.l.bf16 %v245
  %v250 = vunpack.c.l.bf16 %v246
  %v251 = vunpack.c.l.bf16 %v247
  %v252 = vunpack.c.l.bf16 %v248
  %v253 = vld [vmem:[%s0] sm:$0xff]
  %v254 = vld [vmem:[%s0 + $0x8] sm:$0xff]
  %v255 = vld [vmem:[%s0 + $0x10] sm:$0xff]
  %v256 = vld [vmem:[%s0 + $0x18] sm:$0xff]
  %v257 = vld [vmem:[%s6] sm:$0x1]
  %259 = vset.pattern.permute.xlu0 0
  %260 = vperm.xlu0 %259, %v253
  %v261 = vpop.permute.xlu0 %260
  %264 = vset.pattern.permute.xlu0 0
  %265 = vperm.xlu0 %264, %v254
  %v266 = vpop.permute.xlu0 %265
  %269 = vset.pattern.permute.xlu0 0
  %270 = vperm.xlu0 %269, %v255
  %v271 = vpop.permute.xlu0 %270
  %274 = vset.pattern.permute.xlu0 0
  %275 = vperm.xlu0 %274, %v256
  %v276 = vpop.permute.xlu0 %275
  %v279 = vlaneseq
  %v280 = vshrl.u32 %v279, 7
  %v281 = vsub.s32 0, %v280
  %v282 = vrot.slane %v257, %v281
  %v284 = vmul.f32 %v261, %v282
  %v285 = vmul.f32 %v266, %v282
  %v286 = vmul.f32 %v271, %v282
  %v287 = vmul.f32 %v276, %v282
  %v288 = vld [vmem:[%s7] sm:$0x1]
  %v290 = vlaneseq
  %v291 = vshrl.u32 %v290, 7
  %v292 = vsub.s32 0, %v291
  %v293 = vrot.slane %v288, %v292
  %v295 = vadd.f32 %v284, %v293
  %v296 = vadd.f32 %v285, %v293
  %v297 = vadd.f32 %v286, %v293
  %v298 = vadd.f32 %v287, %v293
  %v299 = vand.u32 2147483647, %v295
  %vm300 = vcmp.le.f32.partialorder %v299, 0.7853982
  %vm301 = vcmp.lt.s32.totalorder %v295, 0
  %v302 = vand.u32 %v295, 2139095040
  %v303 = vshrl.u32 %v302, 23
  %v304 = vsub.s32 %v303, 127
  %v305 = vand.u32 2147483647, %v295
  %v306 = vand.u32 %v305, 8388607
  %v307 = vor.u32 %v306, 8388608
  %v308 = vsub.s32 0, %v307
  %v309 = vadd.s32 %v304, 1
  %vm310 = vcmp.gt.s32.totalorder %v309, 0
  %v311 = vsel %vm310, %v309, 0
  %v312 = vshrl.u32 %v311, 5
  %v313 = vand.u32 %v311, 31
  %v314 = vsub.s32 32, %v313
  %v315 = vshrl.u32 683565275, %v314
  %v316 = vshll.u32 683565275, %v313
  %v317 = vshrl.u32 2475754826, %v314
  %v318 = vor.u32 %v316, %v317
  %v319 = vshll.u32 2475754826, %v313
  %v320 = vshrl.u32 2131351028, %v314
  %v321 = vor.u32 %v319, %v320
  %v322 = vshll.u32 2131351028, %v313
  %v323 = vshrl.u32 2102212464, %v314
  %v324 = vor.u32 %v322, %v323
  %v325 = vshll.u32 2102212464, %v313
  %v326 = vshrl.u32 920167782, %v314
  %v327 = vor.u32 %v325, %v326
  %v328 = vshll.u32 920167782, %v313
  %v329 = vshrl.u32 1326507024, %v314
  %v330 = vor.u32 %v328, %v329
  %vm331 = vcmp.lt.s32.totalorder %v312, 1
  %vm332 = vcmp.lt.s32.totalorder %v312, 2
  %vm333 = vcmp.lt.s32.totalorder %v312, 3
  %vm334 = vcmp.lt.s32.totalorder %v312, 4
  %v335 = vsel %vm331, %v315, %v318
  %v336 = vsel %vm334, %v324, 2102212464
  %v337 = vsel %vm333, %v321, %v336
  %v338 = vsel %vm332, %v335, %v337
  %v339 = vsel %vm331, %v318, %v321
  %v340 = vsel %vm334, %v327, 920167782
  %v341 = vsel %vm333, %v324, %v340
  %v342 = vsel %vm332, %v339, %v341
  %v343 = vsel %vm331, %v321, %v324
  %v344 = vsel %vm334, %v330, 1326507024
  %v345 = vsel %vm333, %v327, %v344
  %v346 = vsel %vm332, %v343, %v345
  %v347 = vshll.u32 %v307, 8
  %v348 = vmul.u32.u64.compose %v347, %v346
  %v349 = vextract.low.u32 %v348
  %v350 = vextract.high.u32 %v348
  %v351 = vmul.u32.u64.compose %v347, %v342
  %v352 = vextract.low.u32 %v351
  %v353 = vextract.high.u32 %v351
  %v354 = vmul.u32 %v347, %v338
  %v355 = vadd.s32 %v350, %v352
  %vm356 = vc.u32 %v350, %v352
  %v357 = vadd.s32 %v353, 1
  %v358 = vsel %vm356, %v357, %v353
  %v359 = vadd.s32 %v354, %v358
  %v360 = vadd.s32 %v359, 536870912
  %v361 = vshrl.u32 %v360, 30
  %v362 = vshll.u32 %v361, 30
  %v363 = vsub.s32 %v359, %v362
  %vm364 = vcmp.lt.s32.totalorder %v363, 0
  %v365 = vsub.s32 0, %v363
  %v366 = vsel %vm364, %v365, %v363
  %v367 = vclz %v366
  %v368 = vsub.s32 %v367, 2
  %vm369 = vcmp.gt.s32.totalorder 0, %v368
  %v370 = vsel %vm369, 0, %v368
  %v371 = vsub.s32 32, %v370
  %v372 = vshll.u32 %v363, %v370
  %v373 = vshrl.u32 %v355, %v371
  %v374 = vor.u32 %v372, %v373
  %v375 = vsub.s32 4294967266, %v370
  %v376 = vadd.s32 %v375, 127
  %v377 = vshll.u32 %v376, 23
  %v378 = vor.u32 4788187, %v377
  %v379 = vand.u32 2147483647, %v378
  %v381 = vcvt.s32.f32 %v374
  %v382 = vmul.f32 %v381, %v379
  %v383 = vxor.u32 %v382, 2147483648
  %v384 = vsel %vm301, %v383, %v382
  %v385 = vsub.s32 4, %v361
  %v386 = vsel %vm301, %v385, %v361
  %v387 = vsel %vm300, %v295, %v384
  %v388 = vsel %vm300, 0, %v386
  %v389 = vcosq.f32.pop %v387
  %v390 = vsinq.f32.pop %v387
  %vm391 = vweird.f32 %v295
  %v392 = vadd.s32 %v388, 3
  %v393 = vand.u32 %v392, 3
  %vm394 = vcmp.lt.s32.totalorder %v393, 2
  %vm395 = vcmp.eq.s32.totalorder %v393, 0
  %v396 = vxor.u32 %v390, 2147483648
  %v397 = vsel %vm395, %v389, %v396
  %vm398 = vcmp.eq.s32.totalorder %v393, 2
  %v399 = vxor.u32 %v389, 2147483648
  %v400 = vsel %vm398, %v399, %v390
  %v401 = vsel %vm394, %v397, %v400
  %v402 = vsel %vm391, nan, %v401
  %v403 = vand.u32 2147483647, %v296
  %vm404 = vcmp.le.f32.partialorder %v403, 0.7853982
  %vm405 = vcmp.lt.s32.totalorder %v296, 0
  %v406 = vand.u32 %v296, 2139095040
  %v407 = vshrl.u32 %v406, 23
  %v408 = vsub.s32 %v407, 127
  %v409 = vand.u32 2147483647, %v296
  %v410 = vand.u32 %v409, 8388607
  %v411 = vor.u32 %v410, 8388608
  %v412 = vsub.s32 0, %v411
  %v413 = vadd.s32 %v408, 1
  %vm414 = vcmp.gt.s32.totalorder %v413, 0
  %v415 = vsel %vm414, %v413, 0
  %v416 = vshrl.u32 %v415, 5
  %v417 = vand.u32 %v415, 31
  %v418 = vsub.s32 32, %v417
  %v419 = vshrl.u32 683565275, %v418
  %v420 = vshll.u32 683565275, %v417
  %v421 = vshrl.u32 2475754826, %v418
  %v422 = vor.u32 %v420, %v421
  %v423 = vshll.u32 2475754826, %v417
  %v424 = vshrl.u32 2131351028, %v418
  %v425 = vor.u32 %v423, %v424
  %v426 = vshll.u32 2131351028, %v417
  %v427 = vshrl.u32 2102212464, %v418
  %v428 = vor.u32 %v426, %v427
  %v429 = vshll.u32 2102212464, %v417
  %v430 = vshrl.u32 920167782, %v418
  %v431 = vor.u32 %v429, %v430
  %v432 = vshll.u32 920167782, %v417
  %v433 = vshrl.u32 1326507024, %v418
  %v434 = vor.u32 %v432, %v433
  %vm435 = vcmp.lt.s32.totalorder %v416, 1
  %vm436 = vcmp.lt.s32.totalorder %v416, 2
  %vm437 = vcmp.lt.s32.totalorder %v416, 3
  %vm438 = vcmp.lt.s32.totalorder %v416, 4
  %v439 = vsel %vm435, %v419, %v422
  %v440 = vsel %vm438, %v428, 2102212464
  %v441 = vsel %vm437, %v425, %v440
  %v442 = vsel %vm436, %v439, %v441
  %v443 = vsel %vm435, %v422, %v425
  %v444 = vsel %vm438, %v431, 920167782
  %v445 = vsel %vm437, %v428, %v444
  %v446 = vsel %vm436, %v443, %v445
  %v447 = vsel %vm435, %v425, %v428
  %v448 = vsel %vm438, %v434, 1326507024
  %v449 = vsel %vm437, %v431, %v448
  %v450 = vsel %vm436, %v447, %v449
  %v451 = vshll.u32 %v411, 8
  %v452 = vmul.u32.u64.compose %v451, %v450
  %v453 = vextract.low.u32 %v452
  %v454 = vextract.high.u32 %v452
  %v455 = vmul.u32.u64.compose %v451, %v446
  %v456 = vextract.low.u32 %v455
  %v457 = vextract.high.u32 %v455
  %v458 = vmul.u32 %v451, %v442
  %v459 = vadd.s32 %v454, %v456
  %vm460 = vc.u32 %v454, %v456
  %v461 = vadd.s32 %v457, 1
  %v462 = vsel %vm460, %v461, %v457
  %v463 = vadd.s32 %v458, %v462
  %v464 = vadd.s32 %v463, 536870912
  %v465 = vshrl.u32 %v464, 30
  %v466 = vshll.u32 %v465, 30
  %v467 = vsub.s32 %v463, %v466
  %vm468 = vcmp.lt.s32.totalorder %v467, 0
  %v469 = vsub.s32 0, %v467
  %v470 = vsel %vm468, %v469, %v467
  %v471 = vclz %v470
  %v472 = vsub.s32 %v471, 2
  %vm473 = vcmp.gt.s32.totalorder 0, %v472
  %v474 = vsel %vm473, 0, %v472
  %v475 = vsub.s32 32, %v474
  %v476 = vshll.u32 %v467, %v474
  %v477 = vshrl.u32 %v459, %v475
  %v478 = vor.u32 %v476, %v477
  %v479 = vsub.s32 4294967266, %v474
  %v480 = vadd.s32 %v479, 127
  %v481 = vshll.u32 %v480, 23
  %v482 = vor.u32 4788187, %v481
  %v483 = vand.u32 2147483647, %v482
  %v485 = vcvt.s32.f32 %v478
  %v486 = vmul.f32 %v485, %v483
  %v487 = vxor.u32 %v486, 2147483648
  %v488 = vsel %vm405, %v487, %v486
  %v489 = vsub.s32 4, %v465
  %v490 = vsel %vm405, %v489, %v465
  %v491 = vsel %vm404, %v296, %v488
  %v492 = vsel %vm404, 0, %v490
  %v493 = vcosq.f32.pop %v491
  %v494 = vsinq.f32.pop %v491
  %vm495 = vweird.f32 %v296
  %v496 = vadd.s32 %v492, 3
  %v497 = vand.u32 %v496, 3
  %vm498 = vcmp.lt.s32.totalorder %v497, 2
  %vm499 = vcmp.eq.s32.totalorder %v497, 0
  %v500 = vxor.u32 %v494, 2147483648
  %v501 = vsel %vm499, %v493, %v500
  %vm502 = vcmp.eq.s32.totalorder %v497, 2
  %v503 = vxor.u32 %v493, 2147483648
  %v504 = vsel %vm502, %v503, %v494
  %v505 = vsel %vm498, %v501, %v504
  %v506 = vsel %vm495, nan, %v505
  %v507 = vand.u32 2147483647, %v297
  %vm508 = vcmp.le.f32.partialorder %v507, 0.7853982
  %vm509 = vcmp.lt.s32.totalorder %v297, 0
  %v510 = vand.u32 %v297, 2139095040
  %v511 = vshrl.u32 %v510, 23
  %v512 = vsub.s32 %v511, 127
  %v513 = vand.u32 2147483647, %v297
  %v514 = vand.u32 %v513, 8388607
  %v515 = vor.u32 %v514, 8388608
  %v516 = vsub.s32 0, %v515
  %v517 = vadd.s32 %v512, 1
  %vm518 = vcmp.gt.s32.totalorder %v517, 0
  %v519 = vsel %vm518, %v517, 0
  %v520 = vshrl.u32 %v519, 5
  %v521 = vand.u32 %v519, 31
  %v522 = vsub.s32 32, %v521
  %v523 = vshrl.u32 683565275, %v522
  %v524 = vshll.u32 683565275, %v521
  %v525 = vshrl.u32 2475754826, %v522
  %v526 = vor.u32 %v524, %v525
  %v527 = vshll.u32 2475754826, %v521
  %v528 = vshrl.u32 2131351028, %v522
  %v529 = vor.u32 %v527, %v528
  %v530 = vshll.u32 2131351028, %v521
  %v531 = vshrl.u32 2102212464, %v522
  %v532 = vor.u32 %v530, %v531
  %v533 = vshll.u32 2102212464, %v521
  %v534 = vshrl.u32 920167782, %v522
  %v535 = vor.u32 %v533, %v534
  %v536 = vshll.u32 920167782, %v521
  %v537 = vshrl.u32 1326507024, %v522
  %v538 = vor.u32 %v536, %v537
  %vm539 = vcmp.lt.s32.totalorder %v520, 1
  %vm540 = vcmp.lt.s32.totalorder %v520, 2
  %vm541 = vcmp.lt.s32.totalorder %v520, 3
  %vm542 = vcmp.lt.s32.totalorder %v520, 4
  %v543 = vsel %vm539, %v523, %v526
  %v544 = vsel %vm542, %v532, 2102212464
  %v545 = vsel %vm541, %v529, %v544
  %v546 = vsel %vm540, %v543, %v545
  %v547 = vsel %vm539, %v526, %v529
  %v548 = vsel %vm542, %v535, 920167782
  %v549 = vsel %vm541, %v532, %v548
  %v550 = vsel %vm540, %v547, %v549
  %v551 = vsel %vm539, %v529, %v532
  %v552 = vsel %vm542, %v538, 1326507024
  %v553 = vsel %vm541, %v535, %v552
  %v554 = vsel %vm540, %v551, %v553
  %v555 = vshll.u32 %v515, 8
  %v556 = vmul.u32.u64.compose %v555, %v554
  %v557 = vextract.low.u32 %v556
  %v558 = vextract.high.u32 %v556
  %v559 = vmul.u32.u64.compose %v555, %v550
  %v560 = vextract.low.u32 %v559
  %v561 = vextract.high.u32 %v559
  %v562 = vmul.u32 %v555, %v546
  %v563 = vadd.s32 %v558, %v560
  %vm564 = vc.u32 %v558, %v560
  %v565 = vadd.s32 %v561, 1
  %v566 = vsel %vm564, %v565, %v561
  %v567 = vadd.s32 %v562, %v566
  %v568 = vadd.s32 %v567, 536870912
  %v569 = vshrl.u32 %v568, 30
  %v570 = vshll.u32 %v569, 30
  %v571 = vsub.s32 %v567, %v570
  %vm572 = vcmp.lt.s32.totalorder %v571, 0
  %v573 = vsub.s32 0, %v571
  %v574 = vsel %vm572, %v573, %v571
  %v575 = vclz %v574
  %v576 = vsub.s32 %v575, 2
  %vm577 = vcmp.gt.s32.totalorder 0, %v576
  %v578 = vsel %vm577, 0, %v576
  %v579 = vsub.s32 32, %v578
  %v580 = vshll.u32 %v571, %v578
  %v581 = vshrl.u32 %v563, %v579
  %v582 = vor.u32 %v580, %v581
  %v583 = vsub.s32 4294967266, %v578
  %v584 = vadd.s32 %v583, 127
  %v585 = vshll.u32 %v584, 23
  %v586 = vor.u32 4788187, %v585
  %v587 = vand.u32 2147483647, %v586
  %v589 = vcvt.s32.f32 %v582
  %v590 = vmul.f32 %v589, %v587
  %v591 = vxor.u32 %v590, 2147483648
  %v592 = vsel %vm509, %v591, %v590
  %v593 = vsub.s32 4, %v569
  %v594 = vsel %vm509, %v593, %v569
  %v595 = vsel %vm508, %v297, %v592
  %v596 = vsel %vm508, 0, %v594
  %v597 = vcosq.f32.pop %v595
  %v598 = vsinq.f32.pop %v595
  %vm599 = vweird.f32 %v297
  %v600 = vadd.s32 %v596, 3
  %v601 = vand.u32 %v600, 3
  %vm602 = vcmp.lt.s32.totalorder %v601, 2
  %vm603 = vcmp.eq.s32.totalorder %v601, 0
  %v604 = vxor.u32 %v598, 2147483648
  %v605 = vsel %vm603, %v597, %v604
  %vm606 = vcmp.eq.s32.totalorder %v601, 2
  %v607 = vxor.u32 %v597, 2147483648
  %v608 = vsel %vm606, %v607, %v598
  %v609 = vsel %vm602, %v605, %v608
  %v610 = vsel %vm599, nan, %v609
  %v611 = vand.u32 2147483647, %v298
  %vm612 = vcmp.le.f32.partialorder %v611, 0.7853982
  %vm613 = vcmp.lt.s32.totalorder %v298, 0
  %v614 = vand.u32 %v298, 2139095040
  %v615 = vshrl.u32 %v614, 23
  %v616 = vsub.s32 %v615, 127
  %v617 = vand.u32 2147483647, %v298
  %v618 = vand.u32 %v617, 8388607
  %v619 = vor.u32 %v618, 8388608
  %v620 = vsub.s32 0, %v619
  %v621 = vadd.s32 %v616, 1
  %vm622 = vcmp.gt.s32.totalorder %v621, 0
  %v623 = vsel %vm622, %v621, 0
  %v624 = vshrl.u32 %v623, 5
  %v625 = vand.u32 %v623, 31
  %v626 = vsub.s32 32, %v625
  %v627 = vshrl.u32 683565275, %v626
  %v628 = vshll.u32 683565275, %v625
  %v629 = vshrl.u32 2475754826, %v626
  %v630 = vor.u32 %v628, %v629
  %v631 = vshll.u32 2475754826, %v625
  %v632 = vshrl.u32 2131351028, %v626
  %v633 = vor.u32 %v631, %v632
  %v634 = vshll.u32 2131351028, %v625
  %v635 = vshrl.u32 2102212464, %v626
  %v636 = vor.u32 %v634, %v635
  %v637 = vshll.u32 2102212464, %v625
  %v638 = vshrl.u32 920167782, %v626
  %v639 = vor.u32 %v637, %v638
  %v640 = vshll.u32 920167782, %v625
  %v641 = vshrl.u32 1326507024, %v626
  %v642 = vor.u32 %v640, %v641
  %vm643 = vcmp.lt.s32.totalorder %v624, 1
  %vm644 = vcmp.lt.s32.totalorder %v624, 2
  %vm645 = vcmp.lt.s32.totalorder %v624, 3
  %vm646 = vcmp.lt.s32.totalorder %v624, 4
  %v647 = vsel %vm643, %v627, %v630
  %v648 = vsel %vm646, %v636, 2102212464
  %v649 = vsel %vm645, %v633, %v648
  %v650 = vsel %vm644, %v647, %v649
  %v651 = vsel %vm643, %v630, %v633
  %v652 = vsel %vm646, %v639, 920167782
  %v653 = vsel %vm645, %v636, %v652
  %v654 = vsel %vm644, %v651, %v653
  %v655 = vsel %vm643, %v633, %v636
  %v656 = vsel %vm646, %v642, 1326507024
  %v657 = vsel %vm645, %v639, %v656
  %v658 = vsel %vm644, %v655, %v657
  %v659 = vshll.u32 %v619, 8
  %v660 = vmul.u32.u64.compose %v659, %v658
  %v661 = vextract.low.u32 %v660
  %v662 = vextract.high.u32 %v660
  %v663 = vmul.u32.u64.compose %v659, %v654
  %v664 = vextract.low.u32 %v663
  %v665 = vextract.high.u32 %v663
  %v666 = vmul.u32 %v659, %v650
  %v667 = vadd.s32 %v662, %v664
  %vm668 = vc.u32 %v662, %v664
  %v669 = vadd.s32 %v665, 1
  %v670 = vsel %vm668, %v669, %v665
  %v671 = vadd.s32 %v666, %v670
  %v672 = vadd.s32 %v671, 536870912
  %v673 = vshrl.u32 %v672, 30
  %v674 = vshll.u32 %v673, 30
  %v675 = vsub.s32 %v671, %v674
  %vm676 = vcmp.lt.s32.totalorder %v675, 0
  %v677 = vsub.s32 0, %v675
  %v678 = vsel %vm676, %v677, %v675
  %v679 = vclz %v678
  %v680 = vsub.s32 %v679, 2
  %vm681 = vcmp.gt.s32.totalorder 0, %v680
  %v682 = vsel %vm681, 0, %v680
  %v683 = vsub.s32 32, %v682
  %v684 = vshll.u32 %v675, %v682
  %v685 = vshrl.u32 %v667, %v683
  %v686 = vor.u32 %v684, %v685
  %v687 = vsub.s32 4294967266, %v682
  %v688 = vadd.s32 %v687, 127
  %v689 = vshll.u32 %v688, 23
  %v690 = vor.u32 4788187, %v689
  %v691 = vand.u32 2147483647, %v690
  %v693 = vcvt.s32.f32 %v686
  %v694 = vmul.f32 %v693, %v691
  %v695 = vxor.u32 %v694, 2147483648
  %v696 = vsel %vm613, %v695, %v694
  %v697 = vsub.s32 4, %v673
  %v698 = vsel %vm613, %v697, %v673
  %v699 = vsel %vm612, %v298, %v696
  %v700 = vsel %vm612, 0, %v698
  %v701 = vcosq.f32.pop %v699
  %v702 = vsinq.f32.pop %v699
  %vm703 = vweird.f32 %v298
  %v704 = vadd.s32 %v700, 3
  %v705 = vand.u32 %v704, 3
  %vm706 = vcmp.lt.s32.totalorder %v705, 2
  %vm707 = vcmp.eq.s32.totalorder %v705, 0
  %v708 = vxor.u32 %v702, 2147483648
  %v709 = vsel %vm707, %v701, %v708
  %vm710 = vcmp.eq.s32.totalorder %v705, 2
  %v711 = vxor.u32 %v701, 2147483648
  %v712 = vsel %vm710, %v711, %v702
  %v713 = vsel %vm706, %v709, %v712
  %v714 = vsel %vm703, nan, %v713
  %v715 = vpack.c.bf16 %v240, %v239
  %v720 = vunpack.c.l.b16 %v241
  %v721 = vunpack.c.l.b16 %v242
  %v722 = vunpack.c.l.b16 %v243
  %v723 = vunpack.c.l.b16 %v244
  %v724 = vpack.c.b16 %v721, %v720
  %v725 = vpack.c.b16 %v723, %v722
  %vm726 = vcmask 130048
  %v728 = vsel %vm726, %v724, 0
  %v731 = vsel %vm726, %v725, 0
  %733 = vmatprep.subr.bf16.mxu0 0
  %734 = vmatpush1.bf16.msra.mxu0 0
  %735 = vmatprep.subr.bf16.mxu0 0
  %736 = vmatpush1.bf16.msra.mxu0 0
  %737 = vmatprep.subr.bf16.mxu0 0
  %738 = vmatpush1.bf16.msra.mxu0 0
  %739 = vmatprep.subr.bf16.mxu0 0
  %740 = vmatpush1.bf16.msra.mxu0 0
  %741 = vmatprep.subr.bf16.mxu0 0
  %742 = vmatpush1.bf16.msra.mxu0 0
  %743 = vmatprep.subr.bf16.mxu0 0
  %744 = vmatpush1.bf16.msra.mxu0 0
  %745 = vmatprep.subr.bf16.mxu0 0
  %746 = vmatpush1.bf16.msra.mxu0 0
  %747 = vmatprep.subr.bf16.mxu0 0
  %748 = vmatpush1.bf16.msra.mxu0 %v715
  %749 = vmatprep.subr.bf16.mxu0 0
  %750 = vmatpush2.bf16.msra.mxu0 0
  %751 = vmatprep.subr.bf16.mxu0 0
  %752 = vmatpush2.bf16.msra.mxu0 0
  %753 = vmatprep.subr.bf16.mxu0 0
  %754 = vmatpush2.bf16.msra.mxu0 0
  %755 = vmatprep.subr.bf16.mxu0 0
  %756 = vmatpush2.bf16.msra.mxu0 0
  %757 = vmatprep.subr.bf16.mxu0 0
  %758 = vmatpush2.bf16.msra.mxu0 0
  %759 = vmatprep.subr.bf16.mxu0 0
  %760 = vmatpush2.bf16.msra.mxu0 0
  %761 = vmatprep.subr.bf16.mxu0 0
  %762 = vmatpush2.bf16.msra.mxu0 0
  %763 = vmatprep.subr.bf16.mxu0 0
  %764 = vmatpush2.bf16.msra.mxu0 0
  %765 = vmatprep.mubr.bf16.mxu0 0
  %766 = vmatmul.mubr.bf16.gmra.mxu0 %v728
  %v767 = vpop.f32.mrf.mxu0
  %v768 = vadd.f32 0.0, %v767
  %v769 = vpop.f32.mrf.mxu0
  %v770 = vpop.f32.mrf.mxu0
  %v771 = vadd.f32 0.0, %v770
  %v772 = vpop.f32.mrf.mxu0
  %773 = vmatprep.mubr.bf16.mxu0 0
  %774 = vmatmul.mubr.bf16.gmra.mxu0 %v731
  %v775 = vpop.f32.mrf.mxu0
  %v776 = vadd.f32 0.0, %v775
  %v777 = vpop.f32.mrf.mxu0
  %v778 = vpop.f32.mrf.mxu0
  %v779 = vadd.f32 0.0, %v778
  %v780 = vpop.f32.mrf.mxu0
  %781 = vdwg.mxu0
  %v782 = vld [vmem:[#allocation3] sm:$0xff]
  %v783 = vld [vmem:[#allocation3 + $0x8] sm:$0xff]
  %v784 = vld [vmem:[%s9] sm:$0xff]
  %v785 = vld [vmem:[%s9 + $0x8] sm:$0xff]
  %v786 = vld [vmem:[%s9 + $0x10] sm:$0xff]
  %v787 = vld [vmem:[%s9 + $0x18] sm:$0xff]
  %v788 = vld [vmem:[%s9 + $0x20] sm:$0x1]
  %vm789 = vcmask 269312
  %v791 = vsel %vm789, %v768, 0
  %v794 = vsel %vm789, %v771, 0
  %v797 = vsel %vm789, %v776, 0
  %v800 = vsel %vm789, %v779, 0
  %vm802 = vcmask 1040384
  %v804 = vsel %vm802, %v788, 0
  %806 = vmatprep.subr.mxu0 0.0
  %807 = vmatpush1.msra.mxu0 0.0
  %808 = vmatprep.subr.mxu0 0.0
  %809 = vmatpush1.msra.mxu0 0.0
  %810 = vmatprep.subr.mxu0 0.0
  %811 = vmatpush1.msra.mxu0 0.0
  %812 = vmatprep.subr.mxu0 0.0
  %813 = vmatpush1.msra.mxu0 0.0
  %814 = vmatprep.subr.mxu0 0.0
  %815 = vmatpush1.msra.mxu0 0.0
  %816 = vmatprep.subr.mxu0 0.0
  %817 = vmatpush1.msra.mxu0 0.0
  %818 = vmatprep.subr.mxu0 0.0
  %819 = vmatpush1.msra.mxu0 0.0
  %820 = vmatprep.subr.mxu0 0.0
  %821 = vmatpush1.msra.mxu0 0.0
  %822 = vmatprep.subr.mxu0 0.0
  %823 = vmatpush1.msra.mxu0 0.0
  %824 = vmatprep.subr.mxu0 0.0
  %825 = vmatpush1.msra.mxu0 0.0
  %826 = vmatprep.subr.mxu0 0.0
  %827 = vmatpush1.msra.mxu0 0.0
  %828 = vmatprep.subr.mxu0 0.0
  %829 = vmatpush1.msra.mxu0 %v804
  %830 = vmatprep.subr.mxu0 0.0
  %831 = vmatpush1.msra.mxu0 %v787
  %832 = vmatprep.subr.mxu0 0.0
  %833 = vmatpush1.msra.mxu0 %v786
  %834 = vmatprep.subr.mxu0 0.0
  %835 = vmatpush1.msra.mxu0 %v785
  %836 = vmatprep.subr.mxu0 0.0
  %837 = vmatpush1.msra.mxu0 %v784
  %838 = vmatprep.subr.mxu0 0.0
  %839 = vmatpush2.msra.mxu0 0.0
  %840 = vmatprep.subr.mxu0 0.0
  %841 = vmatpush2.msra.mxu0 0.0
  %842 = vmatprep.subr.mxu0 0.0
  %843 = vmatpush2.msra.mxu0 0.0
  %844 = vmatprep.subr.mxu0 0.0
  %845 = vmatpush2.msra.mxu0 0.0
  %846 = vmatprep.subr.mxu0 0.0
  %847 = vmatpush2.msra.mxu0 0.0
  %848 = vmatprep.subr.mxu0 0.0
  %849 = vmatpush2.msra.mxu0 0.0
  %850 = vmatprep.subr.mxu0 0.0
  %851 = vmatpush2.msra.mxu0 0.0
  %852 = vmatprep.subr.mxu0 0.0
  %853 = vmatpush2.msra.mxu0 0.0
  %854 = vmatprep.subr.mxu0 0.0
  %855 = vmatpush2.msra.mxu0 0.0
  %856 = vmatprep.subr.mxu0 0.0
  %857 = vmatpush2.msra.mxu0 0.0
  %858 = vmatprep.subr.mxu0 0.0
  %859 = vmatpush2.msra.mxu0 0.0
  %860 = vmatprep.subr.mxu0 0.0
  %861 = vmatpush2.msra.mxu0 0.0
  %862 = vmatprep.subr.mxu0 0.0
  %863 = vmatpush2.msra.mxu0 0.0
  %864 = vmatprep.subr.mxu0 0.0
  %865 = vmatpush2.msra.mxu0 0.0
  %866 = vmatprep.subr.mxu0 0.0
  %867 = vmatpush2.msra.mxu0 0.0
  %868 = vmatprep.subr.mxu0 0.0
  %869 = vmatpush2.msra.mxu0 0.0
  %870 = vmatprep.mubr.f32.mxu0 0.0
  %871 = vmatmul.mubr.f32.gmra.mxu0 %v791
  %v872 = vpop.f32.mrf.mxu0
  %v873 = vadd.f32 0.0, %v872
  %v874 = vpop.f32.mrf.mxu0
  %875 = vmatprep.mubr.f32.mxu0 0.0
  %876 = vmatmul.mubr.f32.gmra.mxu0 %v794
  %v877 = vpop.f32.mrf.mxu0
  %v878 = vadd.f32 0.0, %v877
  %v879 = vpop.f32.mrf.mxu0
  %880 = vmatprep.mubr.f32.mxu0 0.0
  %881 = vmatmul.mubr.f32.gmra.mxu0 %v797
  %v882 = vpop.f32.mrf.mxu0
  %v883 = vadd.f32 0.0, %v882
  %v884 = vpop.f32.mrf.mxu0
  %885 = vmatprep.mubr.f32.mxu0 0.0
  %886 = vmatmul.mubr.f32.gmra.mxu0 %v800
  %v887 = vpop.f32.mrf.mxu0
  %v888 = vadd.f32 0.0, %v887
  %v889 = vpop.f32.mrf.mxu0
  %890 = vdwg.mxu0
  %v892 = vsel %vm726, %v249, 0
  %v895 = vsel %vm726, %v250, 0
  %v898 = vsel %vm726, %v251, 0
  %v901 = vsel %vm726, %v252, 0
  %903 = vmatprep.subr.mxu0 0.0
  %904 = vmatpush1.msra.mxu0 0.0
  %905 = vmatprep.subr.mxu0 0.0
  %906 = vmatpush1.msra.mxu0 0.0
  %907 = vmatprep.subr.mxu0 0.0
  %908 = vmatpush1.msra.mxu0 0.0
  %909 = vmatprep.subr.mxu0 0.0
  %910 = vmatpush1.msra.mxu0 0.0
  %911 = vmatprep.subr.mxu0 0.0
  %912 = vmatpush1.msra.mxu0 0.0
  %913 = vmatprep.subr.mxu0 0.0
  %914 = vmatpush1.msra.mxu0 0.0
  %915 = vmatprep.subr.mxu0 0.0
  %916 = vmatpush1.msra.mxu0 0.0
  %917 = vmatprep.subr.mxu0 0.0
  %918 = vmatpush1.msra.mxu0 0.0
  %919 = vmatprep.subr.mxu0 0.0
  %920 = vmatpush1.msra.mxu0 0.0
  %921 = vmatprep.subr.mxu0 0.0
  %922 = vmatpush1.msra.mxu0 0.0
  %923 = vmatprep.subr.mxu0 0.0
  %924 = vmatpush1.msra.mxu0 0.0
  %925 = vmatprep.subr.mxu0 0.0
  %926 = vmatpush1.msra.mxu0 0.0
  %927 = vmatprep.subr.mxu0 0.0
  %928 = vmatpush1.msra.mxu0 0.0
  %929 = vmatprep.subr.mxu0 0.0
  %930 = vmatpush1.msra.mxu0 0.0
  %931 = vmatprep.subr.mxu0 0.0
  %932 = vmatpush1.msra.mxu0 %v783
  %933 = vmatprep.subr.mxu0 0.0
  %934 = vmatpush1.msra.mxu0 %v782
  %935 = vmatprep.subr.mxu0 0.0
  %936 = vmatpush2.msra.mxu0 0.0
  %937 = vmatprep.subr.mxu0 0.0
  %938 = vmatpush2.msra.mxu0 0.0
  %939 = vmatprep.subr.mxu0 0.0
  %940 = vmatpush2.msra.mxu0 0.0
  %941 = vmatprep.subr.mxu0 0.0
  %942 = vmatpush2.msra.mxu0 0.0
  %943 = vmatprep.subr.mxu0 0.0
  %944 = vmatpush2.msra.mxu0 0.0
  %945 = vmatprep.subr.mxu0 0.0
  %946 = vmatpush2.msra.mxu0 0.0
  %947 = vmatprep.subr.mxu0 0.0
  %948 = vmatpush2.msra.mxu0 0.0
  %949 = vmatprep.subr.mxu0 0.0
  %950 = vmatpush2.msra.mxu0 0.0
  %951 = vmatprep.subr.mxu0 0.0
  %952 = vmatpush2.msra.mxu0 0.0
  %953 = vmatprep.subr.mxu0 0.0
  %954 = vmatpush2.msra.mxu0 0.0
  %955 = vmatprep.subr.mxu0 0.0
  %956 = vmatpush2.msra.mxu0 0.0
  %957 = vmatprep.subr.mxu0 0.0
  %958 = vmatpush2.msra.mxu0 0.0
  %959 = vmatprep.subr.mxu0 0.0
  %960 = vmatpush2.msra.mxu0 0.0
  %961 = vmatprep.subr.mxu0 0.0
  %962 = vmatpush2.msra.mxu0 0.0
  %963 = vmatprep.subr.mxu0 0.0
  %964 = vmatpush2.msra.mxu0 0.0
  %965 = vmatprep.subr.mxu0 0.0
  %966 = vmatpush2.msra.mxu0 0.0
  %967 = vmatprep.mubr.f32.mxu0 0.0
  %968 = vmatmul.mubr.f32.gmra.mxu0 %v892
  %v969 = vpop.f32.mrf.mxu0
  %v970 = vadd.f32 %v873, %v969
  %v971 = vpop.f32.mrf.mxu0
  %972 = vmatprep.mubr.f32.mxu0 0.0
  %973 = vmatmul.mubr.f32.gmra.mxu0 %v895
  %v974 = vpop.f32.mrf.mxu0
  %v975 = vadd.f32 %v878, %v974
  %v976 = vpop.f32.mrf.mxu0
  %977 = vmatprep.mubr.f32.mxu0 0.0
  %978 = vmatmul.mubr.f32.gmra.mxu0 %v898
  %v979 = vpop.f32.mrf.mxu0
  %v980 = vadd.f32 %v883, %v979
  %v981 = vpop.f32.mrf.mxu0
  %982 = vmatprep.mubr.f32.mxu0 0.0
  %983 = vmatmul.mubr.f32.gmra.mxu0 %v901
  %v984 = vpop.f32.mrf.mxu0
  %v985 = vadd.f32 %v888, %v984
  %v986 = vpop.f32.mrf.mxu0
  %987 = vdwg.mxu0
  %v988 = vld [vmem:[%s10] sm:$0xff]
  %v989 = vld [vmem:[%s10 + $0x8] sm:$0xff]
  %v991 = vsel %vm726, %v402, 0
  %v994 = vsel %vm726, %v506, 0
  %v997 = vsel %vm726, %v610, 0
  %v1000 = vsel %vm726, %v714, 0
  %1002 = vmatprep.subr.mxu0 0.0
  %1003 = vmatpush1.msra.mxu0 0.0
  %1004 = vmatprep.subr.mxu0 0.0
  %1005 = vmatpush1.msra.mxu0 0.0
  %1006 = vmatprep.subr.mxu0 0.0
  %1007 = vmatpush1.msra.mxu0 0.0
  %1008 = vmatprep.subr.mxu0 0.0
  %1009 = vmatpush1.msra.mxu0 0.0
  %1010 = vmatprep.subr.mxu0 0.0
  %1011 = vmatpush1.msra.mxu0 0.0
  %1012 = vmatprep.subr.mxu0 0.0
  %1013 = vmatpush1.msra.mxu0 0.0
  %1014 = vmatprep.subr.mxu0 0.0
  %1015 = vmatpush1.msra.mxu0 0.0
  %1016 = vmatprep.subr.mxu0 0.0
  %1017 = vmatpush1.msra.mxu0 0.0
  %1018 = vmatprep.subr.mxu0 0.0
  %1019 = vmatpush1.msra.mxu0 0.0
  %1020 = vmatprep.subr.mxu0 0.0
  %1021 = vmatpush1.msra.mxu0 0.0
  %1022 = vmatprep.subr.mxu0 0.0
  %1023 = vmatpush1.msra.mxu0 0.0
  %1024 = vmatprep.subr.mxu0 0.0
  %1025 = vmatpush1.msra.mxu0 0.0
  %1026 = vmatprep.subr.mxu0 0.0
  %1027 = vmatpush1.msra.mxu0 0.0
  %1028 = vmatprep.subr.mxu0 0.0
  %1029 = vmatpush1.msra.mxu0 0.0
  %1030 = vmatprep.subr.mxu0 0.0
  %1031 = vmatpush1.msra.mxu0 %v989
  %1032 = vmatprep.subr.mxu0 0.0
  %1033 = vmatpush1.msra.mxu0 %v988
  %1034 = vmatprep.subr.mxu0 0.0
  %1035 = vmatpush2.msra.mxu0 0.0
  %1036 = vmatprep.subr.mxu0 0.0
  %1037 = vmatpush2.msra.mxu0 0.0
  %1038 = vmatprep.subr.mxu0 0.0
  %1039 = vmatpush2.msra.mxu0 0.0
  %1040 = vmatprep.subr.mxu0 0.0
  %1041 = vmatpush2.msra.mxu0 0.0
  %1042 = vmatprep.subr.mxu0 0.0
  %1043 = vmatpush2.msra.mxu0 0.0
  %1044 = vmatprep.subr.mxu0 0.0
  %1045 = vmatpush2.msra.mxu0 0.0
  %1046 = vmatprep.subr.mxu0 0.0
  %1047 = vmatpush2.msra.mxu0 0.0
  %1048 = vmatprep.subr.mxu0 0.0
  %1049 = vmatpush2.msra.mxu0 0.0
  %1050 = vmatprep.subr.mxu0 0.0
  %1051 = vmatpush2.msra.mxu0 0.0
  %1052 = vmatprep.subr.mxu0 0.0
  %1053 = vmatpush2.msra.mxu0 0.0
  %1054 = vmatprep.subr.mxu0 0.0
  %1055 = vmatpush2.msra.mxu0 0.0
  %1056 = vmatprep.subr.mxu0 0.0
  %1057 = vmatpush2.msra.mxu0 0.0
  %1058 = vmatprep.subr.mxu0 0.0
  %1059 = vmatpush2.msra.mxu0 0.0
  %1060 = vmatprep.subr.mxu0 0.0
  %1061 = vmatpush2.msra.mxu0 0.0
  %1062 = vmatprep.subr.mxu0 0.0
  %1063 = vmatpush2.msra.mxu0 0.0
  %1064 = vmatprep.subr.mxu0 0.0
  %1065 = vmatpush2.msra.mxu0 0.0
  %1066 = vmatprep.mubr.f32.mxu0 0.0
  %1067 = vmatmul.mubr.f32.gmra.mxu0 %v991
  %v1068 = vpop.f32.mrf.mxu0
  %v1069 = vadd.f32 0.0, %v1068
  %v1070 = vpop.f32.mrf.mxu0
  %1071 = vmatprep.mubr.f32.mxu0 0.0
  %1072 = vmatmul.mubr.f32.gmra.mxu0 %v994
  %v1073 = vpop.f32.mrf.mxu0
  %v1074 = vadd.f32 0.0, %v1073
  %v1075 = vpop.f32.mrf.mxu0
  %1076 = vmatprep.mubr.f32.mxu0 0.0
  %1077 = vmatmul.mubr.f32.gmra.mxu0 %v997
  %v1078 = vpop.f32.mrf.mxu0
  %v1079 = vadd.f32 0.0, %v1078
  %v1080 = vpop.f32.mrf.mxu0
  %1081 = vmatprep.mubr.f32.mxu0 0.0
  %1082 = vmatmul.mubr.f32.gmra.mxu0 %v1000
  %v1083 = vpop.f32.mrf.mxu0
  %v1084 = vadd.f32 0.0, %v1083
  %v1085 = vpop.f32.mrf.mxu0
  %1086 = vdwg.mxu0
  %v1087 = vadd.f32 %v970, %v1069
  %v1088 = vadd.f32 %v975, %v1074
  %v1089 = vadd.f32 %v980, %v1079
  %v1090 = vadd.f32 %v985, %v1084
  %vm1091 = vcmp.ge.f32.partialorder %v1087, 0.0
  %vm1092 = vcmp.ge.f32.partialorder %v1088, 0.0
  %vm1093 = vcmp.ge.f32.partialorder %v1089, 0.0
  %vm1094 = vcmp.ge.f32.partialorder %v1090, 0.0
  %v1095 = vmul.f32 %v1087, 0.01
  %v1096 = vmul.f32 %v1088, 0.01
  %v1097 = vmul.f32 %v1089, 0.01
  %v1098 = vmul.f32 %v1090, 0.01
  %v1099 = vsel %vm1091, %v1087, %v1095
  %v1100 = vsel %vm1092, %v1088, %v1096
  %v1101 = vsel %vm1093, %v1089, %v1097
  %v1102 = vsel %vm1094, %v1090, %v1098
  %vm1103 = vcmp.gt.f32.partialorder %v249, 0.0
  %vm1104 = vcmp.gt.f32.partialorder %v250, 0.0
  %vm1105 = vcmp.gt.f32.partialorder %v251, 0.0
  %vm1106 = vcmp.gt.f32.partialorder %v252, 0.0
  %1108 = vset.pattern.permute.xlu0 0
  %1109 = vperm.xlu0 %1108, %v1099
  %v1110 = vpop.permute.xlu0 %1109
  %1113 = vset.pattern.permute.xlu0 0
  %1114 = vperm.xlu0 %1113, %v1100
  %v1115 = vpop.permute.xlu0 %1114
  %1118 = vset.pattern.permute.xlu0 0
  %1119 = vperm.xlu0 %1118, %v1101
  %v1120 = vpop.permute.xlu0 %1119
  %1123 = vset.pattern.permute.xlu0 0
  %1124 = vperm.xlu0 %1123, %v1102
  %v1125 = vpop.permute.xlu0 %1124
  %v1127 = vsel %vm1103, %v1110, -1e+30
  %v1128 = vsel %vm1104, %v1115, -1e+30
  %v1129 = vsel %vm1105, %v1120, -1e+30
  %v1130 = vsel %vm1106, %v1125, -1e+30
  %v1131 = vsel %vm726, %v1127, -inf
  %v1132 = vsel %vm726, %v1128, -inf
  %v1133 = vsel %vm726, %v1129, -inf
  %v1134 = vsel %vm726, %v1130, -inf
  %v1135 = vmax.f32 %v1131, %v1132
  %v1136 = vmax.f32 %v1133, %v1134
  %v1137 = vmax.f32 %v1135, %v1136
  %v1138 = vrot.slane %v1137, 4
  %v1139 = vmax.f32 %v1137, %v1138
  %v1140 = vrot.slane %v1139, 2
  %v1141 = vmax.f32 %v1139, %v1140
  %v1142 = vrot.slane %v1141, 1
  %v1143 = vmax.f32 %v1141, %v1142
  %v1144 = vld [vmem:[#allocation4] sm:$0x1]
  %v1145 = vmax.f32 %v1144, %v1143
  %vm1146 = vcmask 122880
  %1147 = vst.msk [vmem:[#allocation4] sm:$0x1] %vm1146, %v1145
  %v1148 = vsub.f32 %v1144, %v1145
  %v1149 = vmul.f32 %v1148, 1.442695
  %v1150 = vpow.pop %v1149
  %v1152 = vlaneseq
  %v1153 = vshrl.u32 %v1152, 7
  %v1154 = vsub.s32 0, %v1153
  %v1155 = vrot.slane %v1145, %v1154
  %v1157 = vmul.f32 %v249, %v1155
  %v1158 = vmul.f32 %v250, %v1155
  %v1159 = vmul.f32 %v251, %v1155
  %v1160 = vmul.f32 %v252, %v1155
  %v1161 = vsel %vm726, %v1157, 0.0
  %1162 = vadd.xlane.f32.xlu0 %v1161
  %v1163 = vpop.xlane.xlu0 %1162
  %v1164 = vsel %vm726, %v1158, 0.0
  %1165 = vadd.xlane.f32.xlu0 %v1164
  %v1166 = vpop.xlane.xlu0 %1165
  %v1167 = vsel %vm726, %v1159, 0.0
  %1168 = vadd.xlane.f32.xlu0 %v1167
  %v1169 = vpop.xlane.xlu0 %1168
  %v1170 = vsel %vm726, %v1160, 0.0
  %1171 = vadd.xlane.f32.xlu0 %v1170
  %v1172 = vpop.xlane.xlu0 %1171
  %v1173 = vsub.f32 %v1099, %v1163
  %v1174 = vsub.f32 %v1100, %v1166
  %v1175 = vsub.f32 %v1101, %v1169
  %v1176 = vsub.f32 %v1102, %v1172
  %v1177 = vmul.f32 %v1173, 1.442695
  %v1178 = vpow.pop %v1177
  %v1179 = vmul.f32 %v1174, 1.442695
  %v1180 = vpow.pop %v1179
  %v1181 = vmul.f32 %v1175, 1.442695
  %v1182 = vpow.pop %v1181
  %v1183 = vmul.f32 %v1176, 1.442695
  %v1184 = vpow.pop %v1183
  %1186 = vset.pattern.permute.xlu0 0
  %1187 = vperm.xlu0 %1186, %v1178
  %v1188 = vpop.permute.xlu0 %1187
  %1191 = vset.pattern.permute.xlu0 0
  %1192 = vperm.xlu0 %1191, %v1180
  %v1193 = vpop.permute.xlu0 %1192
  %1196 = vset.pattern.permute.xlu0 0
  %1197 = vperm.xlu0 %1196, %v1182
  %v1198 = vpop.permute.xlu0 %1197
  %1201 = vset.pattern.permute.xlu0 0
  %1202 = vperm.xlu0 %1201, %v1184
  %v1203 = vpop.permute.xlu0 %1202
  %v1205 = vmul.f32 %v768, %v1188
  %v1206 = vmul.f32 %v771, %v1193
  %v1207 = vmul.f32 %v776, %v1198
  %v1208 = vmul.f32 %v779, %v1203
  %v1209 = vpack.c.bf16 %v1206, %v1205
  %v1210 = vpack.c.bf16 %v1208, %v1207
  %1211 = vxpose.xlu0.c.b16.start [1/8] %v1209, 128
  %1212 = vxpose.xlu0.c.b16.cont [2/8] %v1210, 128
  %1213 = vxpose.xlu0.c.b16.cont [3/8] 0, 128
  %1214 = vxpose.xlu0.c.b16.cont [4/8] 0, 128
  %1215 = vxpose.xlu0.c.b16.cont [5/8] 0, 128
  %1216 = vxpose.xlu0.c.b16.cont [6/8] 0, 128
  %1217 = vxpose.xlu0.c.b16.cont [7/8] 0, 128
  %1218 = vxpose.xlu0.c.b16.end [8/8] 0, 128
  %v1219 = vpop.trf.xlu0
  %v1220 = vpop.trf.xlu0
  %v1221 = vpop.trf.xlu0
  %v1222 = vpop.trf.xlu0
  %v1223 = vpop.trf.xlu0
  %v1224 = vpop.trf.xlu0
  %v1225 = vpop.trf.xlu0
  %v1226 = vpop.trf.xlu0
  %v1231 = vunpack.c.l.b16 %v245
  %v1232 = vunpack.c.l.b16 %v246
  %v1233 = vunpack.c.l.b16 %v247
  %v1234 = vunpack.c.l.b16 %v248
  %v1235 = vpack.c.b16 %v1232, %v1231
  %v1236 = vpack.c.b16 %v1234, %v1233
  %vm1239 = vcmask 261120
  %v1241 = vsel %vm1239, %v1219, 0
  %v1244 = vsel %vm1239, %v1220, 0
  %v1247 = vsel %vm1239, %v1221, 0
  %1249 = vmatprep.subr.bf16.mxu0 0
  %1250 = vmatpush1.bf16.msra.mxu0 0
  %1251 = vmatprep.subr.bf16.mxu0 0
  %1252 = vmatpush1.bf16.msra.mxu0 0
  %1253 = vmatprep.subr.bf16.mxu0 0
  %1254 = vmatpush1.bf16.msra.mxu0 0
  %1255 = vmatprep.subr.bf16.mxu0 0
  %1256 = vmatpush1.bf16.msra.mxu0 0
  %1257 = vmatprep.subr.bf16.mxu0 0
  %1258 = vmatpush1.bf16.msra.mxu0 0
  %1259 = vmatprep.subr.bf16.mxu0 0
  %1260 = vmatpush1.bf16.msra.mxu0 0
  %1261 = vmatprep.subr.bf16.mxu0 0
  %1262 = vmatpush1.bf16.msra.mxu0 %v1236
  %1263 = vmatprep.subr.bf16.mxu0 0
  %1264 = vmatpush1.bf16.msra.mxu0 %v1235
  %1265 = vmatprep.subr.bf16.mxu0 0
  %1266 = vmatpush2.bf16.msra.mxu0 0
  %1267 = vmatprep.subr.bf16.mxu0 0
  %1268 = vmatpush2.bf16.msra.mxu0 0
  %1269 = vmatprep.subr.bf16.mxu0 0
  %1270 = vmatpush2.bf16.msra.mxu0 0
  %1271 = vmatprep.subr.bf16.mxu0 0
  %1272 = vmatpush2.bf16.msra.mxu0 0
  %1273 = vmatprep.subr.bf16.mxu0 0
  %1274 = vmatpush2.bf16.msra.mxu0 0
  %1275 = vmatprep.subr.bf16.mxu0 0
  %1276 = vmatpush2.bf16.msra.mxu0 0
  %1277 = vmatprep.subr.bf16.mxu0 0
  %1278 = vmatpush2.bf16.msra.mxu0 0
  %1279 = vmatprep.subr.bf16.mxu0 0
  %1280 = vmatpush2.bf16.msra.mxu0 0
  %1281 = vmatprep.mubr.bf16.mxu0 0
  %1282 = vmatmul.mubr.bf16.gmra.mxu0 %v1241
  %v1283 = vpop.f32.mrf.mxu0
  %v1284 = vadd.f32 0.0, %v1283
  %v1285 = vpop.f32.mrf.mxu0
  %v1286 = vpop.f32.mrf.mxu0
  %v1287 = vadd.f32 0.0, %v1286
  %v1288 = vpop.f32.mrf.mxu0
  %1289 = vmatprep.mubr.bf16.mxu0 0
  %1290 = vmatmul.mubr.bf16.gmra.mxu0 %v1244
  %v1291 = vpop.f32.mrf.mxu0
  %v1292 = vadd.f32 0.0, %v1291
  %v1293 = vpop.f32.mrf.mxu0
  %v1294 = vpop.f32.mrf.mxu0
  %v1295 = vadd.f32 0.0, %v1294
  %v1296 = vpop.f32.mrf.mxu0
  %1297 = vmatprep.mubr.bf16.mxu0 0
  %1298 = vmatmul.mubr.bf16.gmra.mxu0 %v1247
  %v1299 = vpop.f32.mrf.mxu0
  %v1300 = vadd.f32 0.0, %v1299
  %v1301 = vpop.f32.mrf.mxu0
  %v1302 = vpop.f32.mrf.mxu0
  %v1303 = vpop.f32.mrf.mxu0
  %1304 = vdwg.mxu0
  %v1305 = vld [vmem:[#allocation5] sm:$0xff]
  %v1306 = vld [vmem:[#allocation5 + $0x8] sm:$0xff]
  %v1307 = vld [vmem:[#allocation5 + $0x10] sm:$0xff]
  %v1308 = vld [vmem:[#allocation5 + $0x18] sm:$0xff]
  %v1309 = vld [vmem:[#allocation5 + $0x20] sm:$0x1]
  %v1311 = vlaneseq
  %v1312 = vshrl.u32 %v1311, 7
  %v1313 = vsub.s32 0, %v1312
  %v1314 = vrot.slane %v1150, %v1313
  %v1316 = vmul.f32 %v1305, %v1314
  %v1317 = vmul.f32 %v1306, %v1314
  %v1318 = vmul.f32 %v1307, %v1314
  %v1319 = vmul.f32 %v1308, %v1314
  %v1320 = vmul.f32 %v1309, %v1314
  %v1321 = vadd.f32 %v1316, %v1284
  %v1322 = vadd.f32 %v1317, %v1287
  %v1323 = vadd.f32 %v1318, %v1292
  %v1324 = vadd.f32 %v1319, %v1295
  %v1325 = vadd.f32 %v1320, %v1300
  %1326 = vst.msk [vmem:[#allocation5] sm:$0xff] %vm726, %v1321
  %1327 = vst.msk [vmem:[#allocation5 + $0x8] sm:$0xff] %vm726, %v1322
  %1328 = vst.msk [vmem:[#allocation5 + $0x10] sm:$0xff] %vm726, %v1323
  %1329 = vst.msk [vmem:[#allocation5 + $0x18] sm:$0xff] %vm726, %v1324
  %1330 = vst.msk [vmem:[#allocation5 + $0x20] sm:$0x1] %vm1146, %v1325
  // Predicated region
  $region50: #{tpu_custom_call.1} parent=0 // pred_check
    %p1331 = pneg %p39
  $region51: #{tpu_custom_call.1} parent=0 // pred_check_branch
    %1333 = sbr.rel (%p1331) target = $region53
  $region52: #{tpu_custom_call.1} parent=0 // pred_region
    %v1334 = vld [vmem:[#allocation5] sm:$0xff]
    %v1335 = vld [vmem:[#allocation5 + $0x8] sm:$0xff]
    %v1336 = vld [vmem:[#allocation5 + $0x10] sm:$0xff]
    %v1337 = vld [vmem:[#allocation5 + $0x18] sm:$0xff]
    %v1338 = vld [vmem:[#allocation5 + $0x20] sm:$0x1]
    %vm1339 = vcmp.gt.f32.partialorder %v1338, 0.0
    %v1340 = vrcp.pop %v1338
    %v1341 = vsel %vm1339, %v1340, 0.0
    %v1342 = vlaneseq
    %v1343 = vshrl.u32 %v1342, 7
    %v1344 = vsub.s32 0, %v1343
    %v1345 = vrot.slane %v1341, %v1344
    %v1346 = vmul.f32 %v1334, %v1345
    %v1347 = vmul.f32 %v1335, %v1345
    %v1348 = vmul.f32 %v1336, %v1345
    %v1349 = vmul.f32 %v1337, %v1345
    %v1350 = vmax.f32 %v1346, 0.0
    %v1351 = vmax.f32 %v1347, 0.0
    %v1352 = vmax.f32 %v1348, 0.0
    %v1353 = vmax.f32 %v1349, 0.0
    %1354 = vst.msk [vmem:[%s11] sm:$0xff] %vm726, %v1350
    %1355 = vst.msk [vmem:[%s11 + $0x8] sm:$0xff] %vm726, %v1351
    %1356 = vst.msk [vmem:[%s11 + $0x10] sm:$0xff] %vm726, %v1352
    %1357 = vst.msk [vmem:[%s11 + $0x18] sm:$0xff] %vm726, %v1353
  $region53: #{tpu_custom_call.1} parent=0 // pred_fallthru
    _
  // Predicated region
  $region54: #{tpu_custom_call.1} parent=0 // pred_check
    _
  $region55: #{tpu_custom_call.1} parent=0 // pred_check_branch
    %1359 = sbr.rel (0) target = $region57
  $region56: #{tpu_custom_call.1} parent=0 // pred_region
    _
  $region57: #{tpu_custom_call.1} parent=0 // pred_fallthru
    _
  // Predicated region
  $region58: #{tpu_custom_call.1} parent=0 // pred_check
    _
  $region59: #{tpu_custom_call.1} parent=0 // pred_check_branch
    %1361 = sbr.rel (0) target = $region61
  $region60: #{tpu_custom_call.1} parent=0 // pred_region
    _
  $region61: #{tpu_custom_call.1} parent=0 // pred_fallthru
    _

</llo_original>
